<compile_context>
chip_gen: v6e
topology: v6e:2x2x1
jax: 0.10.0
libtpu: 0.0.40
codegen_flags: <defaults>
</compile_context>

<pallas_src>
import functools

import jax
import jax.numpy as jnp
from jax.experimental import pallas as pl
from jax.experimental.pallas import tpu as pltpu

_LANE = 128


def _round_up(x, m):
    return (x + m - 1) // m * m


def _pick_tm(m, cap=1024):
    """Largest M tile (<= cap rows, multiple of 8) that keeps >= 2 grid steps."""
    mp = _round_up(m, 8)
    if mp <= 16:
        return mp
    return min(cap, _round_up((mp + 1) // 2, 8))


# ---------------------------------------------------------------------------
# Pallas kernel 1: tiled matmul + bias + ELU  (used for all conv layers)
#   A tile: (tm, Kp) bf16, W: (Kp, 128) bf16, bias: (1, 128) f32.
#   Accumulate in f32 on the MXU, do bias + ELU in f32, store bf16.
# ---------------------------------------------------------------------------
def _mm_bias_elu_kernel(a_ref, w_ref, b_ref, o_ref):
    acc = jnp.dot(a_ref[...], w_ref[...], preferred_element_type=jnp.float32)
    acc = acc + b_ref[...]
    # ELU(alpha=1): x if x>0 else exp(x)-1  (clamp exp arg so the dead branch
    # cannot overflow)
    acc = jnp.where(acc > 0, acc, jnp.exp(jnp.minimum(acc, 0.0)) - 1.0)
    o_ref[...] = acc.astype(o_ref.dtype)


def conv_matmul(a, w_p, b_p, *, out_dtype=jnp.bfloat16):
    """elu(a @ w_p + b_p) with pre-padded weights.  Returns padded (Mp, 128)."""
    M, K = a.shape
    Kp, N = w_p.shape                      # N == 128 (lane-dense output)
    tm = _pick_tm(M)
    Mp = _round_up(M, tm)
    a_p = jnp.pad(a.astype(jnp.bfloat16), ((0, Mp - M), (0, Kp - K)))
    out = pl.pallas_call(
        _mm_bias_elu_kernel,
        out_shape=jax.ShapeDtypeStruct((Mp, N), out_dtype),
        grid=(Mp // tm,),
        in_specs=[
            pl.BlockSpec((tm, Kp), lambda i: (i, 0)),
            pl.BlockSpec((Kp, N), lambda i: (0, 0)),
            pl.BlockSpec((1, N), lambda i: (0, 0)),
        ],
        out_specs=pl.BlockSpec((tm, N), lambda i: (i, 0)),
        compiler_params=pltpu.CompilerParams(dimension_semantics=("parallel",)),
    )(a_p, w_p, b_p)
    return out


# ---------------------------------------------------------------------------
# Pallas kernel 2: fused head
#   dropout(0.6) -> fc1 -> ELU -> dropout(0.7) -> fc2 -> softmax(last dim)
#   Dropout masks (already scaled by 1/(1-p)) are kernel inputs.
# ---------------------------------------------------------------------------
def _head_kernel(x_ref, m1_ref, w1_ref, b1_ref, m2_ref, w2_ref, b2_ref, o_ref,
                 *, num_classes):
    x = x_ref[...] * m1_ref[...]                                   # dropout p=0.6
    h = jnp.dot(x, w1_ref[...], preferred_element_type=jnp.float32) + b1_ref[...]
    h = jnp.where(h > 0, h, jnp.exp(jnp.minimum(h, 0.0)) - 1.0)    # ELU
    h = h * m2_ref[...]                                            # dropout p=0.7
    logits = jnp.dot(h, w2_ref[...], preferred_element_type=jnp.float32) + b2_ref[...]
    # mask padded class columns before softmax
    col = jax.lax.broadcasted_iota(jnp.int32, logits.shape, 1)
    logits = jnp.where(col < num_classes, logits, -1e30)
    m = jnp.max(logits, axis=-1, keepdims=True)
    e = jnp.exp(logits - m)
    o_ref[...] = e / jnp.sum(e, axis=-1, keepdims=True)


def head_forward(x, params, dropout_seed):
    B, D = x.shape
    Dp, H = params["fc1_w"].shape          # (1408, 128)
    Cp = params["fc2_w"].shape[1]          # 128
    C = params["num_classes"]
    Bp = _round_up(B, 8)
    x_p = jnp.pad(x.astype(jnp.float32), ((0, Bp - B), (0, Dp - D)))

    p1, p2 = 0.6, 0.7
    k1, k2 = jax.random.split(jax.random.PRNGKey(dropout_seed))
    m1 = (jax.random.uniform(k1, (Bp, Dp)) >= p1).astype(jnp.float32) * (1.0 / (1.0 - p1))
    m2 = (jax.random.uniform(k2, (Bp, H)) >= p2).astype(jnp.float32) * (1.0 / (1.0 - p2))

    out = pl.pallas_call(
        functools.partial(_head_kernel, num_classes=C),
        out_shape=jax.ShapeDtypeStruct((Bp, Cp), jnp.float32),
        grid=(1,),
        in_specs=[
            pl.BlockSpec((Bp, Dp), lambda i: (0, 0)),
            pl.BlockSpec((Bp, Dp), lambda i: (0, 0)),
            pl.BlockSpec((Dp, H), lambda i: (0, 0)),
            pl.BlockSpec((1, H), lambda i: (0, 0)),
            pl.BlockSpec((Bp, H), lambda i: (0, 0)),
            pl.BlockSpec((H, Cp), lambda i: (0, 0)),
            pl.BlockSpec((1, Cp), lambda i: (0, 0)),
        ],
        out_specs=pl.BlockSpec((Bp, Cp), lambda i: (0, 0)),
    )(x_p, m1, params["fc1_w"], params["fc1_b"], m2, params["fc2_w"], params["fc2_b"])
    return out[:B, :C]


# ---------------------------------------------------------------------------
# Glue: im2col patch extraction (data movement only), parameter init, forward
# ---------------------------------------------------------------------------
# TODO(synk): im2col is plain-JAX data-movement glue; fusing patch extraction
# into the Pallas conv kernel (per-row-block DMA windows) would remove one
# full HBM round trip of the k^2-expanded activation per layer.
def _im2col(x, k, stride):
    """x: (N, H, W, C) -> (N*Ho*Wo, k*k*C) with column order (kh, kw, cin)."""
    n, h, w, c = x.shape
    ho = (h - k) // stride + 1
    wo = (w - k) // stride + 1
    cols = []
    for i in range(k):
        for j in range(k):
            cols.append(
                x[:, i:i + stride * (ho - 1) + 1:stride,
                     j:j + stride * (wo - 1) + 1:stride, :])
    patches = jnp.stack(cols, axis=3)  # (n, ho, wo, k*k, c)
    return patches.reshape(n * ho * wo, k * k * c), (n, ho, wo)


_CONV_CFG = [  # (cin, cout, kernel, stride) — matches DrivingNet.__init__
    (3, 32, 5, 2), (32, 32, 5, 2), (32, 32, 5, 2), (32, 16, 3, 1), (16, 16, 3, 1),
]


def init_params(key):
    """Weights are pre-transposed / zero-padded to lane-dense tiles once here."""
    params = {"conv": []}
    keys = jax.random.split(key, 2 * len(_CONV_CFG) + 4)
    ki = 0
    for cin, cout, k, s in _CONV_CFG:
        bound = float(1.0 / (cin * k * k) ** 0.5)
        w = jax.random.uniform(keys[ki], (cout, cin, k, k), jnp.float32, -bound, bound); ki += 1
        b = jax.random.uniform(keys[ki], (cout,), jnp.float32, -bound, bound); ki += 1
        K = k * k * cin
        Kp = _round_up(K, 128)
        # (cout, cin, kh, kw) -> (kh, kw, cin, cout) -> (K, cout), pad to (Kp, 128) bf16
        wm = jnp.transpose(w, (2, 3, 1, 0)).reshape(K, cout)
        w_p = jnp.zeros((Kp, _LANE), jnp.bfloat16).at[:K, :cout].set(wm.astype(jnp.bfloat16))
        b_p = jnp.zeros((1, _LANE), jnp.float32).at[0, :cout].set(b)
        params["conv"].append({"w": w_p, "b": b_p, "k": k, "s": s, "cout": cout})

    D, H, C = 1296, 128, 4
    Dp = _round_up(D, 128)
    bound = float(1.0 / D ** 0.5)
    fc1_w = jax.random.uniform(keys[ki], (D, H), jnp.float32, -bound, bound); ki += 1
    fc1_b = jax.random.uniform(keys[ki], (H,), jnp.float32, -bound, bound); ki += 1
    bound = float(1.0 / H ** 0.5)
    fc2_w = jax.random.uniform(keys[ki], (H, C), jnp.float32, -bound, bound); ki += 1
    fc2_b = jax.random.uniform(keys[ki], (C,), jnp.float32, -bound, bound); ki += 1
    params["fc1_w"] = jnp.zeros((Dp, H), jnp.float32).at[:D, :].set(fc1_w)
    params["fc1_b"] = fc1_b.reshape(1, H)
    params["fc2_w"] = jnp.zeros((H, _LANE), jnp.float32).at[:, :C].set(fc2_w)
    params["fc2_b"] = jnp.zeros((1, _LANE), jnp.float32).at[0, :C].set(fc2_b)
    params["num_classes"] = C
    return params


def driving_net_forward(x_nchw, params, dropout_seed=0):
    # NCHW f32 -> NHWC bf16 (activations kept bf16 through the conv stack)
    x = jnp.transpose(x_nchw, (0, 2, 3, 1)).astype(jnp.bfloat16)
    for layer in params["conv"]:
        k, s, cout = layer["k"], layer["s"], layer["cout"]
        cols, (n, ho, wo) = _im2col(x, k, s)
        out = conv_matmul(cols, layer["w"], layer["b"])      # conv + bias + ELU
        x = out[:n * ho * wo, :cout].reshape(n, ho, wo, cout)
    # flatten in (C, H, W) order exactly like torch's x.view(B, -1)
    flat = jnp.transpose(x, (0, 3, 1, 2)).reshape(x.shape[0], -1)  # (B, 1296)
    return head_forward(flat.astype(jnp.float32), params, dropout_seed)


if __name__ == "__main__":
    key = jax.random.PRNGKey(0)
    pkey, xkey = jax.random.split(key)
    params = init_params(pkey)
    # Smallest natural input consistent with fc1's 1296 fan-in: (B=2, 3, 128, 128)
    x = jax.random.normal(xkey, (2, 3, 128, 128), dtype=jnp.float32)

    probs = driving_net_forward(x, params, dropout_seed=0)
    probs = jax.block_until_ready(probs)

    assert probs.shape == (2, 4), probs.shape
    assert bool(jnp.all(jnp.isfinite(probs)))
    assert bool(jnp.allclose(jnp.sum(probs, axis=-1), 1.0, atol=1e-5))
    print("KERNEL_OK")
</pallas_src>

<mosaic_0001>
module attributes {stable_mosaic.version = 11 : i64} {
  func.func @_mm_bias_elu_kernel(%arg0: i32, %arg1: memref<1024x128xbf16, #tpu.memory_space<vmem>>, %arg2: memref<128x128xbf16, #tpu.memory_space<vmem>>, %arg3: memref<1x128xf32, #tpu.memory_space<vmem>>, %arg4: memref<1024x128xbf16, #tpu.memory_space<vmem>>) attributes {dimension_semantics = [#tpu.dimension_semantics<parallel>], iteration_bounds = array<i64: 8>, scalar_prefetch = 0 : i64, scratch_operands = 0 : i64, tpu.core_type = #tpu.core_type<tc>, window_params = [{transform_indices = @transform_0, window_bounds = array<i64: 1024, 128>}, {pipeline_mode = #tpu.pipeline_mode<synchronous>, transform_indices = @transform_1, window_bounds = array<i64: 128, 128>}, {pipeline_mode = #tpu.pipeline_mode<synchronous>, transform_indices = @transform_2, window_bounds = array<i64: 1, 128>}, {transform_indices = @transform_3, window_bounds = array<i64: 1024, 128>}]} {
    %c0 = arith.constant 0 : index
    %c0_0 = arith.constant 0 : index
    %0 = vector.load %arg1[%c0, %c0_0] : memref<1024x128xbf16, #tpu.memory_space<vmem>>, vector<1024x128xbf16>
    %c0_1 = arith.constant 0 : index
    %c0_2 = arith.constant 0 : index
    %1 = vector.load %arg2[%c0_1, %c0_2] : memref<128x128xbf16, #tpu.memory_space<vmem>>, vector<128x128xbf16>
    %cst = arith.constant dense<0.000000e+00> : vector<1024x128xf32>
    %2 = tpu.matmul %0, %1, %cst {dimension_numbers = #tpu.dot_dimension_numbers<[1], [0], [0], [1], [0, 0, 1, 1], [], []>} : vector<1024x128xbf16>, vector<128x128xbf16>, vector<1024x128xf32> -> vector<1024x128xf32>
    %c0_3 = arith.constant 0 : index
    %c0_4 = arith.constant 0 : index
    %3 = vector.load %arg3[%c0_3, %c0_4] : memref<1x128xf32, #tpu.memory_space<vmem>>, vector<1x128xf32>
    %4 = vector.broadcast %3 : vector<1x128xf32> to vector<1024x128xf32>
    %5 = arith.addf %2, %4 : vector<1024x128xf32>
    %cst_5 = arith.constant 0.000000e+00 : f32
    %6 = vector.broadcast %cst_5 : f32 to vector<1024x128xf32>
    %7 = arith.cmpf ogt, %5, %6 : vector<1024x128xf32>
    %cst_6 = arith.constant 0.000000e+00 : f32
    %8 = vector.broadcast %cst_6 : f32 to vector<1024x128xf32>
    %9 = arith.minimumf %5, %8 : vector<1024x128xf32>
    %10 = math.exp %9 : vector<1024x128xf32>
    %cst_7 = arith.constant 1.000000e+00 : f32
    %11 = vector.broadcast %cst_7 : f32 to vector<1024x128xf32>
    %12 = arith.subf %10, %11 : vector<1024x128xf32>
    %13 = arith.select %7, %5, %12 : vector<1024x128xi1>, vector<1024x128xf32>
    %14 = arith.truncf %13 : vector<1024x128xf32> to vector<1024x128xbf16>
    %c0_8 = arith.constant 0 : index
    %c0_9 = arith.constant 0 : index
    %15 = vector.load %arg4[%c0_8, %c0_9] : memref<1024x128xbf16, #tpu.memory_space<vmem>>, vector<1024x128xbf16>
    tpu.vector_store %arg4[%c0_8, %c0_9], %14 {strides = array<i32>} : memref<1024x128xbf16, #tpu.memory_space<vmem>>, vector<1024x128xbf16>,
    return
  }
  func.func @transform_0(%arg0: i32) -> (i32, i32) {
    %c0_i32 = arith.constant 0 : i32
    %c0_i32_0 = arith.constant 0 : i32
    return %arg0, %c0_i32 : i32, i32
  }
  func.func @transform_1(%arg0: i32) -> (i32, i32) {
    %c0_i32 = arith.constant 0 : i32
    %c0_i32_0 = arith.constant 0 : i32
    %c0_i32_1 = arith.constant 0 : i32
    return %c0_i32, %c0_i32_0 : i32, i32
  }
  func.func @transform_2(%arg0: i32) -> (i32, i32) {
    %c0_i32 = arith.constant 0 : i32
    %c0_i32_0 = arith.constant 0 : i32
    %c0_i32_1 = arith.constant 0 : i32
    return %c0_i32, %c0_i32_0 : i32, i32
  }
  func.func @transform_3(%arg0: i32) -> (i32, i32) {
    %c0_i32 = arith.constant 0 : i32
    %c0_i32_0 = arith.constant 0 : i32
    return %arg0, %c0_i32 : i32, i32
  }
}

</mosaic_0001>

<llo_original>
// kernel: tpu_custom_call.1
$region0: #{tpu_custom_call.1}
  #allocation0 [shape = 'u32[]', space=smem, size = 0x4, offset = 0x4, fixed_abs, tag = 'smem constant byte address 0x4 - core index']
  #allocation1 [shape = 'u32[144,128]{1,0:T(1,128)}', space=vmem, size = 0x12000, scoped, tag = 'internal scratch']
  %s0 = inlined_call_operand.hbm [shape: bf16[8192,128], index: 0, kind: input, shape index: {}]
  %s1 = inlined_call_operand.hbm [shape: bf16[128,128], index: 1, kind: input, shape index: {}]
  %s2 = inlined_call_operand.hbm [shape: f32[1,128], index: 2, kind: input, shape index: {}]
  %s3 = inlined_call_operand.hbm [shape: bf16[8192,128], index: 3, kind: output, shape index: {}]
  %s4 = sld [smem:[#allocation0]]
  $region57: #{tpu_custom_call.1} parent=0
    _
  %s6 = ssub.s32 1, %s4
  %s7 = scalar_select 0, %s6, %s4
  $region1: #{tpu_custom_call.1} parent=0
    #allocation2 [shape = 'u8[524288]{0}', space=vmem, size = 0x80000, scoped, tag = 'input window, operand 0']
    #allocation3 [shape = 's32[2]{0}', space=sflag, size = 0x8, scoped, tag = 'scoped memory for tpu_custom_call.1']
    #allocation4 [shape = 's32[2]{0}', space=sflag, size = 0x8, scoped, tag = 'scoped memory for tpu_custom_call.1']
    #allocation5 [shape = 'u8[32768]{0}', space=vmem, size = 0x8000, scoped, tag = 'input window, operand 1, single buffered']
    #allocation6 [shape = 's32[1]{0}', space=sflag, size = 0x4, scoped, tag = 'scoped memory for tpu_custom_call.1']
    #allocation7 [shape = 'u8[512]{0}', space=vmem, size = 0x400, scoped, tag = 'input window, operand 2, single buffered']
    #allocation8 [shape = 'u8[524288]{0}', space=vmem, size = 0x80000, scoped, tag = 'output window, operand 0']
    %8 = vsyncpa [#allocation3], 0
    %s9 = scalar_lea.sflag [#allocation3], 1
    %10 = vsyncpa %s9, 0
    %11 = vsyncpa [#allocation6], 0
    %12 = vsyncpa [#allocation4], 0
    %s13 = scalar_lea.sflag [#allocation4], 1
    %14 = vsyncpa %s13, 0
    loop: start=0, step=1, limit=10
    $region2: #{tpu_custom_call.1} parent=1 // loop_pre_header
      _
    $region3: #{tpu_custom_call.1} parent=1 // loop_header
      %s16 = sphi 0, %s20
      %p17 = scmp.ge.s32.totalorder %s16, 10
      %s26 = sphi 0, %s28
      %s29 = sphi 0, %s26
      %s30 = sphi 0, %s29
      %s46 = sphi 0, %s30
      %s50 = sphi 0, %s50
      %s52 = sphi 0, %s50
      %s53 = sphi 0, %s52
      %s67 = sphi 0, %s53
      %s71 = sphi 0, %s71
      %s73 = sphi 0, %s71
      %s74 = sphi 0, %s73
      %s88 = sphi 0, %s74
      %s94 = sphi 0, %s96
      %s97 = sphi 0, %s94
      %s98 = sphi 0, %s97
      %s114 = sphi 0, %s98
    $region4: #{tpu_custom_call.1} parent=1 // loop_header_branch
      %19 = sbr.rel (%p17) target = $region8
    $region5: #{tpu_custom_call.1} parent=1 // loop_body
      %s21 = ssub.s32 %s16, 1
      %s22 = ssub.s32 %s16, 2
      %s23 = sadd.s32 %s16, 1
      %s24 = ssub.s32 %s16, %s23
      %p25 = scmp.eq.s32.totalorder %s24, 0
      %s27 = sadd.s32 %s26, 1
      %s28 = scalar_select %p25, %s26, %s27
      %p31 = pneg %p25
      %p32 = scmp.eq.s32.totalorder %s16, 7
      %p33 = por %p31, %p32
      %p34 = scmp.ne.s32.totalorder %s26, %s29
      %p35 = scmp.eq.s32.totalorder %s16, 0
      %p36 = por %p34, %p35
      %p37 = scmp.ne.s32.totalorder %s26, %s29
      %p38 = scmp.eq.s32.totalorder %s21, 7
      %p39 = por %p37, %p38
      %p40 = scmp.ne.s32.totalorder %s29, %s30
      %p41 = scmp.eq.s32.totalorder %s21, 0
      %p42 = por %p40, %p41
      %p43 = scmp.ne.s32.totalorder %s29, %s30
      %p44 = scmp.eq.s32.totalorder %s22, 7
      %p45 = por %p43, %p44
      %p47 = scmp.ne.s32.totalorder %s30, %s46
      %p48 = scmp.eq.s32.totalorder %s22, 0
      %p49 = por %p47, %p48
      %s51 = sadd.s32 %s50, 1
      %p54 = scmp.eq.s32.totalorder %s16, 7
      %p55 = scmp.ne.s32.totalorder %s50, %s52
      %p56 = scmp.eq.s32.totalorder %s16, 0
      %p57 = por %p55, %p56
      %p58 = scmp.ne.s32.totalorder %s50, %s52
      %p59 = scmp.eq.s32.totalorder %s21, 7
      %p60 = por %p58, %p59
      %p61 = scmp.ne.s32.totalorder %s52, %s53
      %p62 = scmp.eq.s32.totalorder %s21, 0
      %p63 = por %p61, %p62
      %p64 = scmp.ne.s32.totalorder %s52, %s53
      %p65 = scmp.eq.s32.totalorder %s22, 7
      %p66 = por %p64, %p65
      %p68 = scmp.ne.s32.totalorder %s53, %s67
      %p69 = scmp.eq.s32.totalorder %s22, 0
      %p70 = por %p68, %p69
      %s72 = sadd.s32 %s71, 1
      %p75 = scmp.eq.s32.totalorder %s16, 7
      %p76 = scmp.ne.s32.totalorder %s71, %s73
      %p77 = scmp.eq.s32.totalorder %s16, 0
      %p78 = por %p76, %p77
      %p79 = scmp.ne.s32.totalorder %s71, %s73
      %p80 = scmp.eq.s32.totalorder %s21, 7
      %p81 = por %p79, %p80
      %p82 = scmp.ne.s32.totalorder %s73, %s74
      %p83 = scmp.eq.s32.totalorder %s21, 0
      %p84 = por %p82, %p83
      %p85 = scmp.ne.s32.totalorder %s73, %s74
      %p86 = scmp.eq.s32.totalorder %s22, 7
      %p87 = por %p85, %p86
      %p89 = scmp.ne.s32.totalorder %s74, %s88
      %p90 = scmp.eq.s32.totalorder %s22, 0
      %p91 = por %p89, %p90
      %s92 = ssub.s32 %s16, %s23
      %p93 = scmp.eq.s32.totalorder %s92, 0
      %s95 = sadd.s32 %s94, 1
      %s96 = scalar_select %p93, %s94, %s95
      %p99 = pneg %p93
      %p100 = scmp.eq.s32.totalorder %s16, 7
      %p101 = por %p99, %p100
      %p102 = scmp.ne.s32.totalorder %s94, %s97
      %p103 = scmp.eq.s32.totalorder %s16, 0
      %p104 = por %p102, %p103
      %p105 = scmp.ne.s32.totalorder %s94, %s97
      %p106 = scmp.eq.s32.totalorder %s21, 7
      %p107 = por %p105, %p106
      %p108 = scmp.ne.s32.totalorder %s97, %s98
      %p109 = scmp.eq.s32.totalorder %s21, 0
      %p110 = por %p108, %p109
      %p111 = scmp.ne.s32.totalorder %s97, %s98
      %p112 = scmp.eq.s32.totalorder %s22, 7
      %p113 = por %p111, %p112
      %p115 = scmp.ne.s32.totalorder %s98, %s114
      %p116 = scmp.eq.s32.totalorder %s22, 0
      %p117 = por %p115, %p116
      %p118 = scmp.le.s32.totalorder 1, %s16
      %p119 = scmp.lt.s32.totalorder %s16, 9
      %p120 = pnand %p118, %p119
      %p121 = pneg %p120
      // Predicated region
      $region9: #{tpu_custom_call.1} parent=5 // pred_check
        _
      $region10: #{tpu_custom_call.1} parent=5 // pred_check_branch
        %123 = sbr.rel (%p120) target = $region12
      $region11: #{tpu_custom_call.1} parent=5 // pred_region
        %s124 = ssub.s32 %s16, 1
        // Predicated region
        $region13: #{tpu_custom_call.1} parent=11 // pred_check
          %p125 = pneg %p63
        $region14: #{tpu_custom_call.1} parent=11 // pred_check_branch
          %127 = sbr.rel (%p125) target = $region16
        $region15: #{tpu_custom_call.1} parent=11 // pred_region
          %s129 = ssub.s32 1024, 1024
          %130 = vsyncadd [#allocation6], %s129
          %s131 = sshll.u32 [#allocation5], 4
          %s132 = int_to_ptr.vmem [resolvable:$true] %s131
          %137 = dma.hbm_to_vmem [thread:$0]  %s1, 1024, %s132, [#allocation6], 64, 64, 4
        $region16: #{tpu_custom_call.1} parent=11 // pred_fallthru
          _
        // Predicated region
        $region17: #{tpu_custom_call.1} parent=11 // pred_check
          %p138 = pneg %p84
        $region18: #{tpu_custom_call.1} parent=11 // pred_check_branch
          %140 = sbr.rel (%p138) target = $region20
        $region19: #{tpu_custom_call.1} parent=11 // pred_region
          %s142 = ssub.s32 16, 16
          %143 = vsyncadd [#allocation6], %s142
          %s145 = sshll.u32 [#allocation7], 4
          %s146 = int_to_ptr.vmem [resolvable:$true] %s145
          %148 = dma.hbm_to_vmem [thread:$0]  %s2, 16, %s146, [#allocation6]
        $region20: #{tpu_custom_call.1} parent=11 // pred_fallthru
          _
      $region12: #{tpu_custom_call.1} parent=5 // pred_fallthru
        _
      %p149 = scmp.lt.s32.totalorder %s16, 8
      // Predicated region
      $region21: #{tpu_custom_call.1} parent=5 // pred_check
        %p150 = pneg %p149
      $region22: #{tpu_custom_call.1} parent=5 // pred_check_branch
        %152 = sbr.rel (%p150) target = $region24
      $region23: #{tpu_custom_call.1} parent=5 // pred_region
        // Predicated region
        $region25: #{tpu_custom_call.1} parent=23 // pred_check
          %p153 = pneg %p36
        $region26: #{tpu_custom_call.1} parent=23 // pred_check_branch
          %155 = sbr.rel (%p153) target = $region28
        $region27: #{tpu_custom_call.1} parent=23 // pred_region
          %s156 = sand.u32 %s26, 1
          %s157 = scalar_lea.sflag [#allocation3], %s156
          %s158 = sand.u32 %s26, 1
          %s159 = smul.addr %s158, 512
          %s160 = scalar_lea.vmem [#allocation2], %s159
          %s161 = smul.u32 128, %s16
          %s163 = ssub.s32 8192, 8192
          %164 = vsyncadd %s157, %s163
          %s165 = smul.addr %s161, 64
          %s166 = scalar_lea.hbm %s0, %s165
          %s167 = sshll.u32 %s160, 4
          %s168 = int_to_ptr.vmem [resolvable:$true] %s167
          %173 = dma.hbm_to_vmem [thread:$0]  %s166, 8192, %s168, %s157, 64, 64, 4
        $region28: #{tpu_custom_call.1} parent=23 // pred_fallthru
          _
      $region24: #{tpu_custom_call.1} parent=5 // pred_fallthru
        _
      %p174 = scmp.le.s32.totalorder 1, %s16
      %p175 = scmp.lt.s32.totalorder %s16, 9
      %p176 = pnand %p174, %p175
      %p177 = pneg %p176
      // Predicated region
      $region29: #{tpu_custom_call.1} parent=5 // pred_check
        _
      $region30: #{tpu_custom_call.1} parent=5 // pred_check_branch
        %179 = sbr.rel (%p176) target = $region32
      $region31: #{tpu_custom_call.1} parent=5 // pred_region
        %s180 = ssub.s32 %s16, 1
        %s181 = sand.u32 %s29, 1
        %s182 = scalar_lea.sflag [#allocation3], %s181
        %s183 = sand.u32 %s29, 1
        %s184 = smul.addr %s183, 512
        %s185 = scalar_lea.vmem [#allocation2], %s184
        // Predicated region
        $region33: #{tpu_custom_call.1} parent=31 // pred_check
          %p186 = pneg %p42
        $region34: #{tpu_custom_call.1} parent=31 // pred_check_branch
          %188 = sbr.rel (%p186) target = $region36
        $region35: #{tpu_custom_call.1} parent=31 // pred_region
          %189 = dma.done %s182, 8192
        $region36: #{tpu_custom_call.1} parent=31 // pred_fallthru
          _
        // Predicated region
        $region37: #{tpu_custom_call.1} parent=31 // pred_check
          %p190 = pneg %p63
        $region38: #{tpu_custom_call.1} parent=31 // pred_check_branch
          %192 = sbr.rel (%p190) target = $region40
        $region39: #{tpu_custom_call.1} parent=31 // pred_region
          %193 = dma.done [#allocation6], 1024
        $region40: #{tpu_custom_call.1} parent=31 // pred_fallthru
          _
        // Predicated region
        $region41: #{tpu_custom_call.1} parent=31 // pred_check
          %p194 = pneg %p84
        $region42: #{tpu_custom_call.1} parent=31 // pred_check_branch
          %196 = sbr.rel (%p194) target = $region44
        $region43: #{tpu_custom_call.1} parent=31 // pred_region
          %197 = dma.done [#allocation6], 16
        $region44: #{tpu_custom_call.1} parent=31 // pred_fallthru
          _
        %s198 = sand.u32 %s29, 1
        %s199 = scalar_lea.sflag [#allocation3], %s198
        %s200 = sand.u32 %s29, 1
        %s201 = smul.addr %s200, 512
        %s202 = scalar_lea.vmem [#allocation2], %s201
        %p203 = pneg %p42
        %p204 = pneg %p39
        %p205 = pneg %p63
        %p206 = pneg %p60
        %p207 = pneg %p84
        %p208 = pneg %p81
        %p209 = pneg %p110
        %p210 = pneg %p107
        %s211 = sand.u32 %s97, 1
        %s212 = scalar_lea.sflag [#allocation4], %s211
        %s213 = sand.u32 %s97, 1
        %s214 = smul.addr %s213, 512
        %s215 = scalar_lea.vmem [#allocation8], %s214
        %s216 = smul.u32 128, %s21
        %s217 = smul.u32 128, %s21
        %v219 = vld [vmem:[%s185] sm:$0xf]
        %v220 = vld [vmem:[%s185 + $0x4] sm:$0xf]
        %v221 = vld [vmem:[%s185 + $0x8] sm:$0xf]
        %v222 = vld [vmem:[%s185 + $0xc] sm:$0xf]
        %v223 = vld [vmem:[%s185 + $0x10] sm:$0xf]
        %v224 = vld [vmem:[%s185 + $0x14] sm:$0xf]
        %v225 = vld [vmem:[%s185 + $0x18] sm:$0xf]
        %v226 = vld [vmem:[%s185 + $0x1c] sm:$0xf]
        %v227 = vld [vmem:[%s185 + $0x20] sm:$0xf]
        %v228 = vld [vmem:[%s185 + $0x24] sm:$0xf]
        %v229 = vld [vmem:[%s185 + $0x28] sm:$0xf]
        %v230 = vld [vmem:[%s185 + $0x2c] sm:$0xf]
        %v231 = vld [vmem:[%s185 + $0x30] sm:$0xf]
        %v232 = vld [vmem:[%s185 + $0x34] sm:$0xf]
        %v233 = vld [vmem:[%s185 + $0x38] sm:$0xf]
        %v234 = vld [vmem:[%s185 + $0x3c] sm:$0xf]
        %v235 = vld [vmem:[%s185 + $0x40] sm:$0xf]
        %v236 = vld [vmem:[%s185 + $0x44] sm:$0xf]
        %v237 = vld [vmem:[%s185 + $0x48] sm:$0xf]
        %v238 = vld [vmem:[%s185 + $0x4c] sm:$0xf]
        %v239 = vld [vmem:[%s185 + $0x50] sm:$0xf]
        %v240 = vld [vmem:[%s185 + $0x54] sm:$0xf]
        %v241 = vld [vmem:[%s185 + $0x58] sm:$0xf]
        %v242 = vld [vmem:[%s185 + $0x5c] sm:$0xf]
        %v243 = vld [vmem:[%s185 + $0x60] sm:$0xf]
        %v244 = vld [vmem:[%s185 + $0x64] sm:$0xf]
        %v245 = vld [vmem:[%s185 + $0x68] sm:$0xf]
        %v246 = vld [vmem:[%s185 + $0x6c] sm:$0xf]
        %v247 = vld [vmem:[%s185 + $0x70] sm:$0xf]
        %v248 = vld [vmem:[%s185 + $0x74] sm:$0xf]
        %v249 = vld [vmem:[%s185 + $0x78] sm:$0xf]
        %v250 = vld [vmem:[%s185 + $0x7c] sm:$0xf]
        %v251 = vld [vmem:[%s185 + $0x80] sm:$0xf]
        %v252 = vld [vmem:[%s185 + $0x84] sm:$0xf]
        %v253 = vld [vmem:[%s185 + $0x88] sm:$0xf]
        %v254 = vld [vmem:[%s185 + $0x8c] sm:$0xf]
        %v255 = vld [vmem:[%s185 + $0x90] sm:$0xf]
        %v256 = vld [vmem:[%s185 + $0x94] sm:$0xf]
        %v257 = vld [vmem:[%s185 + $0x98] sm:$0xf]
        %v258 = vld [vmem:[%s185 + $0x9c] sm:$0xf]
        %v259 = vld [vmem:[%s185 + $0xa0] sm:$0xf]
        %v260 = vld [vmem:[%s185 + $0xa4] sm:$0xf]
        %v261 = vld [vmem:[%s185 + $0xa8] sm:$0xf]
        %v262 = vld [vmem:[%s185 + $0xac] sm:$0xf]
        %v263 = vld [vmem:[%s185 + $0xb0] sm:$0xf]
        %v264 = vld [vmem:[%s185 + $0xb4] sm:$0xf]
        %v265 = vld [vmem:[%s185 + $0xb8] sm:$0xf]
        %v266 = vld [vmem:[%s185 + $0xbc] sm:$0xf]
        %v267 = vld [vmem:[%s185 + $0xc0] sm:$0xf]
        %v268 = vld [vmem:[%s185 + $0xc4] sm:$0xf]
        %v269 = vld [vmem:[%s185 + $0xc8] sm:$0xf]
        %v270 = vld [vmem:[%s185 + $0xcc] sm:$0xf]
        %v271 = vld [vmem:[%s185 + $0xd0] sm:$0xf]
        %v272 = vld [vmem:[%s185 + $0xd4] sm:$0xf]
        %v273 = vld [vmem:[%s185 + $0xd8] sm:$0xf]
        %v274 = vld [vmem:[%s185 + $0xdc] sm:$0xf]
        %v275 = vld [vmem:[%s185 + $0xe0] sm:$0xf]
        %v276 = vld [vmem:[%s185 + $0xe4] sm:$0xf]
        %v277 = vld [vmem:[%s185 + $0xe8] sm:$0xf]
        %v278 = vld [vmem:[%s185 + $0xec] sm:$0xf]
        %v279 = vld [vmem:[%s185 + $0xf0] sm:$0xf]
        %v280 = vld [vmem:[%s185 + $0xf4] sm:$0xf]
        %v281 = vld [vmem:[%s185 + $0xf8] sm:$0xf]
        %v282 = vld [vmem:[%s185 + $0xfc] sm:$0xf]
        %v283 = vld [vmem:[%s185 + $0x100] sm:$0xf]
        %v284 = vld [vmem:[%s185 + $0x104] sm:$0xf]
        %v285 = vld [vmem:[%s185 + $0x108] sm:$0xf]
        %v286 = vld [vmem:[%s185 + $0x10c] sm:$0xf]
        %v287 = vld [vmem:[%s185 + $0x110] sm:$0xf]
        %v288 = vld [vmem:[%s185 + $0x114] sm:$0xf]
        %v289 = vld [vmem:[%s185 + $0x118] sm:$0xf]
        %v290 = vld [vmem:[%s185 + $0x11c] sm:$0xf]
        %v291 = vld [vmem:[%s185 + $0x120] sm:$0xf]
        %v292 = vld [vmem:[%s185 + $0x124] sm:$0xf]
        %v293 = vld [vmem:[%s185 + $0x128] sm:$0xf]
        %v294 = vld [vmem:[%s185 + $0x12c] sm:$0xf]
        %v295 = vld [vmem:[%s185 + $0x130] sm:$0xf]
        %v296 = vld [vmem:[%s185 + $0x134] sm:$0xf]
        %v297 = vld [vmem:[%s185 + $0x138] sm:$0xf]
        %v298 = vld [vmem:[%s185 + $0x13c] sm:$0xf]
        %v299 = vld [vmem:[%s185 + $0x140] sm:$0xf]
        %v300 = vld [vmem:[%s185 + $0x144] sm:$0xf]
        %v301 = vld [vmem:[%s185 + $0x148] sm:$0xf]
        %v302 = vld [vmem:[%s185 + $0x14c] sm:$0xf]
        %v303 = vld [vmem:[%s185 + $0x150] sm:$0xf]
        %v304 = vld [vmem:[%s185 + $0x154] sm:$0xf]
        %v305 = vld [vmem:[%s185 + $0x158] sm:$0xf]
        %v306 = vld [vmem:[%s185 + $0x15c] sm:$0xf]
        %v307 = vld [vmem:[%s185 + $0x160] sm:$0xf]
        %v308 = vld [vmem:[%s185 + $0x164] sm:$0xf]
        %v309 = vld [vmem:[%s185 + $0x168] sm:$0xf]
        %v310 = vld [vmem:[%s185 + $0x16c] sm:$0xf]
        %v311 = vld [vmem:[%s185 + $0x170] sm:$0xf]
        %v312 = vld [vmem:[%s185 + $0x174] sm:$0xf]
        %v313 = vld [vmem:[%s185 + $0x178] sm:$0xf]
        %v314 = vld [vmem:[%s185 + $0x17c] sm:$0xf]
        %v315 = vld [vmem:[%s185 + $0x180] sm:$0xf]
        %v316 = vld [vmem:[%s185 + $0x184] sm:$0xf]
        %v317 = vld [vmem:[%s185 + $0x188] sm:$0xf]
        %v318 = vld [vmem:[%s185 + $0x18c] sm:$0xf]
        %v319 = vld [vmem:[%s185 + $0x190] sm:$0xf]
        %v320 = vld [vmem:[%s185 + $0x194] sm:$0xf]
        %v321 = vld [vmem:[%s185 + $0x198] sm:$0xf]
        %v322 = vld [vmem:[%s185 + $0x19c] sm:$0xf]
        %v323 = vld [vmem:[%s185 + $0x1a0] sm:$0xf]
        %v324 = vld [vmem:[%s185 + $0x1a4] sm:$0xf]
        %v325 = vld [vmem:[%s185 + $0x1a8] sm:$0xf]
        %v326 = vld [vmem:[%s185 + $0x1ac] sm:$0xf]
        %v327 = vld [vmem:[%s185 + $0x1b0] sm:$0xf]
        %v328 = vld [vmem:[%s185 + $0x1b4] sm:$0xf]
        %v329 = vld [vmem:[%s185 + $0x1b8] sm:$0xf]
        %v330 = vld [vmem:[%s185 + $0x1bc] sm:$0xf]
        %v331 = vld [vmem:[%s185 + $0x1c0] sm:$0xf]
        %v332 = vld [vmem:[%s185 + $0x1c4] sm:$0xf]
        %v333 = vld [vmem:[%s185 + $0x1c8] sm:$0xf]
        %v334 = vld [vmem:[%s185 + $0x1cc] sm:$0xf]
        %v335 = vld [vmem:[%s185 + $0x1d0] sm:$0xf]
        %v336 = vld [vmem:[%s185 + $0x1d4] sm:$0xf]
        %v337 = vld [vmem:[%s185 + $0x1d8] sm:$0xf]
        %v338 = vld [vmem:[%s185 + $0x1dc] sm:$0xf]
        %v339 = vld [vmem:[%s185 + $0x1e0] sm:$0xf]
        %v340 = vld [vmem:[%s185 + $0x1e4] sm:$0xf]
        %v341 = vld [vmem:[%s185 + $0x1e8] sm:$0xf]
        %v342 = vld [vmem:[%s185 + $0x1ec] sm:$0xf]
        %v343 = vld [vmem:[%s185 + $0x1f0] sm:$0xf]
        %v344 = vld [vmem:[%s185 + $0x1f4] sm:$0xf]
        %v345 = vld [vmem:[%s185 + $0x1f8] sm:$0xf]
        %v346 = vld [vmem:[%s185 + $0x1fc] sm:$0xf]
        %v347 = vld [vmem:[#allocation5] sm:$0xf]
        %v348 = vld [vmem:[#allocation5 + $0x4] sm:$0xf]
        %v349 = vld [vmem:[#allocation5 + $0x8] sm:$0xf]
        %v350 = vld [vmem:[#allocation5 + $0xc] sm:$0xf]
        %v351 = vld [vmem:[#allocation5 + $0x10] sm:$0xf]
        %v352 = vld [vmem:[#allocation5 + $0x14] sm:$0xf]
        %v353 = vld [vmem:[#allocation5 + $0x18] sm:$0xf]
        %v354 = vld [vmem:[#allocation5 + $0x1c] sm:$0xf]
        %v355 = vld [vmem:[#allocation5 + $0x20] sm:$0xf]
        %v356 = vld [vmem:[#allocation5 + $0x24] sm:$0xf]
        %v357 = vld [vmem:[#allocation5 + $0x28] sm:$0xf]
        %v358 = vld [vmem:[#allocation5 + $0x2c] sm:$0xf]
        %v359 = vld [vmem:[#allocation5 + $0x30] sm:$0xf]
        %v360 = vld [vmem:[#allocation5 + $0x34] sm:$0xf]
        %v361 = vld [vmem:[#allocation5 + $0x38] sm:$0xf]
        %v362 = vld [vmem:[#allocation5 + $0x3c] sm:$0xf]
        %v363 = vld [vmem:[#allocation7] sm:$0x1]
        %v365 = vlaneseq
        %v366 = vshrl.u32 %v365, 7
        %v367 = vsub.s32 0, %v366
        %v368 = vrot.slane %v363, %v367
        %v498 = vunpack.c.l.b16 %v219
        %v499 = vunpack.c.l.b16 %v220
        %v500 = vunpack.c.l.b16 %v221
        %v501 = vunpack.c.l.b16 %v222
        %v502 = vunpack.c.l.b16 %v223
        %v503 = vunpack.c.l.b16 %v224
        %v504 = vunpack.c.l.b16 %v225
        %v505 = vunpack.c.l.b16 %v226
        %v506 = vunpack.c.l.b16 %v227
        %v507 = vunpack.c.l.b16 %v228
        %v508 = vunpack.c.l.b16 %v229
        %v509 = vunpack.c.l.b16 %v230
        %v510 = vunpack.c.l.b16 %v231
        %v511 = vunpack.c.l.b16 %v232
        %v512 = vunpack.c.l.b16 %v233
        %v513 = vunpack.c.l.b16 %v234
        %v514 = vunpack.c.l.b16 %v235
        %v515 = vunpack.c.l.b16 %v236
        %v516 = vunpack.c.l.b16 %v237
        %v517 = vunpack.c.l.b16 %v238
        %v518 = vunpack.c.l.b16 %v239
        %v519 = vunpack.c.l.b16 %v240
        %v520 = vunpack.c.l.b16 %v241
        %v521 = vunpack.c.l.b16 %v242
        %v522 = vunpack.c.l.b16 %v243
        %v523 = vunpack.c.l.b16 %v244
        %v524 = vunpack.c.l.b16 %v245
        %v525 = vunpack.c.l.b16 %v246
        %v526 = vunpack.c.l.b16 %v247
        %v527 = vunpack.c.l.b16 %v248
        %v528 = vunpack.c.l.b16 %v249
        %v529 = vunpack.c.l.b16 %v250
        %v530 = vunpack.c.l.b16 %v251
        %v531 = vunpack.c.l.b16 %v252
        %v532 = vunpack.c.l.b16 %v253
        %v533 = vunpack.c.l.b16 %v254
        %v534 = vunpack.c.l.b16 %v255
        %v535 = vunpack.c.l.b16 %v256
        %v536 = vunpack.c.l.b16 %v257
        %v537 = vunpack.c.l.b16 %v258
        %v538 = vunpack.c.l.b16 %v259
        %v539 = vunpack.c.l.b16 %v260
        %v540 = vunpack.c.l.b16 %v261
        %v541 = vunpack.c.l.b16 %v262
        %v542 = vunpack.c.l.b16 %v263
        %v543 = vunpack.c.l.b16 %v264
        %v544 = vunpack.c.l.b16 %v265
        %v545 = vunpack.c.l.b16 %v266
        %v546 = vunpack.c.l.b16 %v267
        %v547 = vunpack.c.l.b16 %v268
        %v548 = vunpack.c.l.b16 %v269
        %v549 = vunpack.c.l.b16 %v270
        %v550 = vunpack.c.l.b16 %v271
        %v551 = vunpack.c.l.b16 %v272
        %v552 = vunpack.c.l.b16 %v273
        %v553 = vunpack.c.l.b16 %v274
        %v554 = vunpack.c.l.b16 %v275
        %v555 = vunpack.c.l.b16 %v276
        %v556 = vunpack.c.l.b16 %v277
        %v557 = vunpack.c.l.b16 %v278
        %v558 = vunpack.c.l.b16 %v279
        %v559 = vunpack.c.l.b16 %v280
        %v560 = vunpack.c.l.b16 %v281
        %v561 = vunpack.c.l.b16 %v282
        %v562 = vunpack.c.l.b16 %v283
        %v563 = vunpack.c.l.b16 %v284
        %v564 = vunpack.c.l.b16 %v285
        %v565 = vunpack.c.l.b16 %v286
        %v566 = vunpack.c.l.b16 %v287
        %v567 = vunpack.c.l.b16 %v288
        %v568 = vunpack.c.l.b16 %v289
        %v569 = vunpack.c.l.b16 %v290
        %v570 = vunpack.c.l.b16 %v291
        %v571 = vunpack.c.l.b16 %v292
        %v572 = vunpack.c.l.b16 %v293
        %v573 = vunpack.c.l.b16 %v294
        %v574 = vunpack.c.l.b16 %v295
        %v575 = vunpack.c.l.b16 %v296
        %v576 = vunpack.c.l.b16 %v297
        %v577 = vunpack.c.l.b16 %v298
        %v578 = vunpack.c.l.b16 %v299
        %v579 = vunpack.c.l.b16 %v300
        %v580 = vunpack.c.l.b16 %v301
        %v581 = vunpack.c.l.b16 %v302
        %v582 = vunpack.c.l.b16 %v303
        %v583 = vunpack.c.l.b16 %v304
        %v584 = vunpack.c.l.b16 %v305
        %v585 = vunpack.c.l.b16 %v306
        %v586 = vunpack.c.l.b16 %v307
        %v587 = vunpack.c.l.b16 %v308
        %v588 = vunpack.c.l.b16 %v309
        %v589 = vunpack.c.l.b16 %v310
        %v590 = vunpack.c.l.b16 %v311
        %v591 = vunpack.c.l.b16 %v312
        %v592 = vunpack.c.l.b16 %v313
        %v593 = vunpack.c.l.b16 %v314
        %v594 = vunpack.c.l.b16 %v315
        %v595 = vunpack.c.l.b16 %v316
        %v596 = vunpack.c.l.b16 %v317
        %v597 = vunpack.c.l.b16 %v318
        %v598 = vunpack.c.l.b16 %v319
        %v599 = vunpack.c.l.b16 %v320
        %v600 = vunpack.c.l.b16 %v321
        %v601 = vunpack.c.l.b16 %v322
        %v602 = vunpack.c.l.b16 %v323
        %v603 = vunpack.c.l.b16 %v324
        %v604 = vunpack.c.l.b16 %v325
        %v605 = vunpack.c.l.b16 %v326
        %v606 = vunpack.c.l.b16 %v327
        %v607 = vunpack.c.l.b16 %v328
        %v608 = vunpack.c.l.b16 %v329
        %v609 = vunpack.c.l.b16 %v330
        %v610 = vunpack.c.l.b16 %v331
        %v611 = vunpack.c.l.b16 %v332
        %v612 = vunpack.c.l.b16 %v333
        %v613 = vunpack.c.l.b16 %v334
        %v614 = vunpack.c.l.b16 %v335
        %v615 = vunpack.c.l.b16 %v336
        %v616 = vunpack.c.l.b16 %v337
        %v617 = vunpack.c.l.b16 %v338
        %v618 = vunpack.c.l.b16 %v339
        %v619 = vunpack.c.l.b16 %v340
        %v620 = vunpack.c.l.b16 %v341
        %v621 = vunpack.c.l.b16 %v342
        %v622 = vunpack.c.l.b16 %v343
        %v623 = vunpack.c.l.b16 %v344
        %v624 = vunpack.c.l.b16 %v345
        %v625 = vunpack.c.l.b16 %v346
        %v626 = vpack.c.b16 %v499, %v498
        %v627 = vpack.c.b16 %v501, %v500
        %v628 = vpack.c.b16 %v503, %v502
        %v629 = vpack.c.b16 %v505, %v504
        %v630 = vpack.c.b16 %v507, %v506
        %v631 = vpack.c.b16 %v509, %v508
        %v632 = vpack.c.b16 %v511, %v510
        %v633 = vpack.c.b16 %v513, %v512
        %v634 = vpack.c.b16 %v515, %v514
        %v635 = vpack.c.b16 %v517, %v516
        %v636 = vpack.c.b16 %v519, %v518
        %v637 = vpack.c.b16 %v521, %v520
        %v638 = vpack.c.b16 %v523, %v522
        %v639 = vpack.c.b16 %v525, %v524
        %v640 = vpack.c.b16 %v527, %v526
        %v641 = vpack.c.b16 %v529, %v528
        %v642 = vpack.c.b16 %v531, %v530
        %v643 = vpack.c.b16 %v533, %v532
        %v644 = vpack.c.b16 %v535, %v534
        %v645 = vpack.c.b16 %v537, %v536
        %v646 = vpack.c.b16 %v539, %v538
        %v647 = vpack.c.b16 %v541, %v540
        %v648 = vpack.c.b16 %v543, %v542
        %v649 = vpack.c.b16 %v545, %v544
        %v650 = vpack.c.b16 %v547, %v546
        %v651 = vpack.c.b16 %v549, %v548
        %v652 = vpack.c.b16 %v551, %v550
        %v653 = vpack.c.b16 %v553, %v552
        %v654 = vpack.c.b16 %v555, %v554
        %v655 = vpack.c.b16 %v557, %v556
        %v656 = vpack.c.b16 %v559, %v558
        %v657 = vpack.c.b16 %v561, %v560
        %v658 = vpack.c.b16 %v563, %v562
        %v659 = vpack.c.b16 %v565, %v564
        %v660 = vpack.c.b16 %v567, %v566
        %v661 = vpack.c.b16 %v569, %v568
        %v662 = vpack.c.b16 %v571, %v570
        %v663 = vpack.c.b16 %v573, %v572
        %v664 = vpack.c.b16 %v575, %v574
        %v665 = vpack.c.b16 %v577, %v576
        %v666 = vpack.c.b16 %v579, %v578
        %v667 = vpack.c.b16 %v581, %v580
        %v668 = vpack.c.b16 %v583, %v582
        %v669 = vpack.c.b16 %v585, %v584
        %v670 = vpack.c.b16 %v587, %v586
        %v671 = vpack.c.b16 %v589, %v588
        %v672 = vpack.c.b16 %v591, %v590
        %v673 = vpack.c.b16 %v593, %v592
        %v674 = vpack.c.b16 %v595, %v594
        %v675 = vpack.c.b16 %v597, %v596
        %v676 = vpack.c.b16 %v599, %v598
        %v677 = vpack.c.b16 %v601, %v600
        %v678 = vpack.c.b16 %v603, %v602
        %v679 = vpack.c.b16 %v605, %v604
        %v680 = vpack.c.b16 %v607, %v606
        %v681 = vpack.c.b16 %v609, %v608
        %v682 = vpack.c.b16 %v611, %v610
        %v683 = vpack.c.b16 %v613, %v612
        %v684 = vpack.c.b16 %v615, %v614
        %v685 = vpack.c.b16 %v617, %v616
        %v686 = vpack.c.b16 %v619, %v618
        %v687 = vpack.c.b16 %v621, %v620
        %v688 = vpack.c.b16 %v623, %v622
        %v689 = vpack.c.b16 %v625, %v624
        %v770 = vunpack.c.l.b16 %v347
        %v771 = vunpack.c.l.b16 %v348
        %v772 = vunpack.c.l.b16 %v349
        %v773 = vunpack.c.l.b16 %v350
        %v774 = vunpack.c.l.b16 %v351
        %v775 = vunpack.c.l.b16 %v352
        %v776 = vunpack.c.l.b16 %v353
        %v777 = vunpack.c.l.b16 %v354
        %v778 = vunpack.c.l.b16 %v355
        %v779 = vunpack.c.l.b16 %v356
        %v780 = vunpack.c.l.b16 %v357
        %v781 = vunpack.c.l.b16 %v358
        %v782 = vunpack.c.l.b16 %v359
        %v783 = vunpack.c.l.b16 %v360
        %v784 = vunpack.c.l.b16 %v361
        %v785 = vunpack.c.l.b16 %v362
        %v786 = vpack.c.b16 %v771, %v770
        %v787 = vpack.c.b16 %v773, %v772
        %v788 = vpack.c.b16 %v775, %v774
        %v789 = vpack.c.b16 %v777, %v776
        %v790 = vpack.c.b16 %v779, %v778
        %v791 = vpack.c.b16 %v781, %v780
        %v792 = vpack.c.b16 %v783, %v782
        %v793 = vpack.c.b16 %v785, %v784
        %802 = vmatprep.subr.bf16.mxu0 0
        %803 = vmatpush1.bf16.msra.mxu0 %v793
        %804 = vmatprep.subr.bf16.mxu0 0
        %805 = vmatpush1.bf16.msra.mxu0 %v792
        %806 = vmatprep.subr.bf16.mxu0 0
        %807 = vmatpush1.bf16.msra.mxu0 %v791
        %808 = vmatprep.subr.bf16.mxu0 0
        %809 = vmatpush1.bf16.msra.mxu0 %v790
        %810 = vmatprep.subr.bf16.mxu0 0
        %811 = vmatpush1.bf16.msra.mxu0 %v789
        %812 = vmatprep.subr.bf16.mxu0 0
        %813 = vmatpush1.bf16.msra.mxu0 %v788
        %814 = vmatprep.subr.bf16.mxu0 0
        %815 = vmatpush1.bf16.msra.mxu0 %v787
        %816 = vmatprep.subr.bf16.mxu0 0
        %817 = vmatpush1.bf16.msra.mxu0 %v786
        %818 = vmatprep.subr.bf16.mxu0 0
        %819 = vmatpush2.bf16.msra.mxu0 0
        %820 = vmatprep.subr.bf16.mxu0 0
        %821 = vmatpush2.bf16.msra.mxu0 0
        %822 = vmatprep.subr.bf16.mxu0 0
        %823 = vmatpush2.bf16.msra.mxu0 0
        %824 = vmatprep.subr.bf16.mxu0 0
        %825 = vmatpush2.bf16.msra.mxu0 0
        %826 = vmatprep.subr.bf16.mxu0 0
        %827 = vmatpush2.bf16.msra.mxu0 0
        %828 = vmatprep.subr.bf16.mxu0 0
        %829 = vmatpush2.bf16.msra.mxu0 0
        %830 = vmatprep.subr.bf16.mxu0 0
        %831 = vmatpush2.bf16.msra.mxu0 0
        %832 = vmatprep.subr.bf16.mxu0 0
        %833 = vmatpush2.bf16.msra.mxu0 0
        %834 = vmatprep.mubr.bf16.mxu0 0
        %835 = vmatmul.mubr.bf16.gmra.mxu0 %v626
        %v836 = vpop.f32.mrf.mxu0
        %v837 = vadd.f32 %v368, %v836
        %v838 = vpop.f32.mrf.mxu0
        %v839 = vpop.f32.mrf.mxu0
        %v840 = vadd.f32 %v368, %v839
        %v841 = vpop.f32.mrf.mxu0
        %842 = vmatprep.mubr.bf16.mxu0 0
        %843 = vmatmul.mubr.bf16.gmra.mxu0 %v627
        %v844 = vpop.f32.mrf.mxu0
        %v845 = vadd.f32 %v368, %v844
        %v846 = vpop.f32.mrf.mxu0
        %v847 = vpop.f32.mrf.mxu0
        %v848 = vadd.f32 %v368, %v847
        %v849 = vpop.f32.mrf.mxu0
        %850 = vmatprep.mubr.bf16.mxu0 0
        %851 = vmatmul.mubr.bf16.gmra.mxu0 %v628
        %v852 = vpop.f32.mrf.mxu0
        %v853 = vadd.f32 %v368, %v852
        %v854 = vpop.f32.mrf.mxu0
        %v855 = vpop.f32.mrf.mxu0
        %v856 = vadd.f32 %v368, %v855
        %v857 = vpop.f32.mrf.mxu0
        %858 = vmatprep.mubr.bf16.mxu0 0
        %859 = vmatmul.mubr.bf16.gmra.mxu0 %v629
        %v860 = vpop.f32.mrf.mxu0
        %v861 = vadd.f32 %v368, %v860
        %v862 = vpop.f32.mrf.mxu0
        %v863 = vpop.f32.mrf.mxu0
        %v864 = vadd.f32 %v368, %v863
        %v865 = vpop.f32.mrf.mxu0
        %866 = vmatprep.mubr.bf16.mxu0 0
        %867 = vmatmul.mubr.bf16.gmra.mxu0 %v630
        %v868 = vpop.f32.mrf.mxu0
        %v869 = vadd.f32 %v368, %v868
        %v870 = vpop.f32.mrf.mxu0
        %v871 = vpop.f32.mrf.mxu0
        %v872 = vadd.f32 %v368, %v871
        %v873 = vpop.f32.mrf.mxu0
        %874 = vmatprep.mubr.bf16.mxu0 0
        %875 = vmatmul.mubr.bf16.gmra.mxu0 %v631
        %v876 = vpop.f32.mrf.mxu0
        %v877 = vadd.f32 %v368, %v876
        %v878 = vpop.f32.mrf.mxu0
        %v879 = vpop.f32.mrf.mxu0
        %v880 = vadd.f32 %v368, %v879
        %v881 = vpop.f32.mrf.mxu0
        %882 = vmatprep.mubr.bf16.mxu0 0
        %883 = vmatmul.mubr.bf16.gmra.mxu0 %v632
        %v884 = vpop.f32.mrf.mxu0
        %v885 = vadd.f32 %v368, %v884
        %v886 = vpop.f32.mrf.mxu0
        %v887 = vpop.f32.mrf.mxu0
        %v888 = vadd.f32 %v368, %v887
        %v889 = vpop.f32.mrf.mxu0
        %890 = vmatprep.mubr.bf16.mxu0 0
        %891 = vmatmul.mubr.bf16.gmra.mxu0 %v633
        %v892 = vpop.f32.mrf.mxu0
        %v893 = vadd.f32 %v368, %v892
        %v894 = vpop.f32.mrf.mxu0
        %v895 = vpop.f32.mrf.mxu0
        %v896 = vadd.f32 %v368, %v895
        %v897 = vpop.f32.mrf.mxu0
        %898 = vmatprep.mubr.bf16.mxu0 0
        %899 = vmatmul.mubr.bf16.gmra.mxu0 %v634
        %v900 = vpop.f32.mrf.mxu0
        %v901 = vadd.f32 %v368, %v900
        %v902 = vpop.f32.mrf.mxu0
        %v903 = vpop.f32.mrf.mxu0
        %v904 = vadd.f32 %v368, %v903
        %v905 = vpop.f32.mrf.mxu0
        %906 = vmatprep.mubr.bf16.mxu0 0
        %907 = vmatmul.mubr.bf16.gmra.mxu0 %v635
        %v908 = vpop.f32.mrf.mxu0
        %v909 = vadd.f32 %v368, %v908
        %v910 = vpop.f32.mrf.mxu0
        %v911 = vpop.f32.mrf.mxu0
        %v912 = vadd.f32 %v368, %v911
        %v913 = vpop.f32.mrf.mxu0
        %914 = vmatprep.mubr.bf16.mxu0 0
        %915 = vmatmul.mubr.bf16.gmra.mxu0 %v636
        %v916 = vpop.f32.mrf.mxu0
        %v917 = vadd.f32 %v368, %v916
        %v918 = vpop.f32.mrf.mxu0
        %v919 = vpop.f32.mrf.mxu0
        %v920 = vadd.f32 %v368, %v919
        %v921 = vpop.f32.mrf.mxu0
        %922 = vmatprep.mubr.bf16.mxu0 0
        %923 = vmatmul.mubr.bf16.gmra.mxu0 %v637
        %v924 = vpop.f32.mrf.mxu0
        %v925 = vadd.f32 %v368, %v924
        %v926 = vpop.f32.mrf.mxu0
        %v927 = vpop.f32.mrf.mxu0
        %v928 = vadd.f32 %v368, %v927
        %v929 = vpop.f32.mrf.mxu0
        %930 = vmatprep.mubr.bf16.mxu0 0
        %931 = vmatmul.mubr.bf16.gmra.mxu0 %v638
        %v932 = vpop.f32.mrf.mxu0
        %v933 = vadd.f32 %v368, %v932
        %v934 = vpop.f32.mrf.mxu0
        %v935 = vpop.f32.mrf.mxu0
        %v936 = vadd.f32 %v368, %v935
        %v937 = vpop.f32.mrf.mxu0
        %938 = vmatprep.mubr.bf16.mxu0 0
        %939 = vmatmul.mubr.bf16.gmra.mxu0 %v639
        %v940 = vpop.f32.mrf.mxu0
        %v941 = vadd.f32 %v368, %v940
        %v942 = vpop.f32.mrf.mxu0
        %v943 = vpop.f32.mrf.mxu0
        %v944 = vadd.f32 %v368, %v943
        %v945 = vpop.f32.mrf.mxu0
        %946 = vmatprep.mubr.bf16.mxu0 0
        %947 = vmatmul.mubr.bf16.gmra.mxu0 %v640
        %v948 = vpop.f32.mrf.mxu0
        %v949 = vadd.f32 %v368, %v948
        %v950 = vpop.f32.mrf.mxu0
        %v951 = vpop.f32.mrf.mxu0
        %v952 = vadd.f32 %v368, %v951
        %v953 = vpop.f32.mrf.mxu0
        %954 = vmatprep.mubr.bf16.mxu0 0
        %955 = vmatmul.mubr.bf16.gmra.mxu0 %v641
        %v956 = vpop.f32.mrf.mxu0
        %v957 = vadd.f32 %v368, %v956
        %v958 = vpop.f32.mrf.mxu0
        %v959 = vpop.f32.mrf.mxu0
        %v960 = vadd.f32 %v368, %v959
        %v961 = vpop.f32.mrf.mxu0
        %962 = vmatprep.mubr.bf16.mxu0 0
        %963 = vmatmul.mubr.bf16.gmra.mxu0 %v642
        %v964 = vpop.f32.mrf.mxu0
        %v965 = vadd.f32 %v368, %v964
        %v966 = vpop.f32.mrf.mxu0
        %v967 = vpop.f32.mrf.mxu0
        %v968 = vadd.f32 %v368, %v967
        %v969 = vpop.f32.mrf.mxu0
        %970 = vmatprep.mubr.bf16.mxu0 0
        %971 = vmatmul.mubr.bf16.gmra.mxu0 %v643
        %v972 = vpop.f32.mrf.mxu0
        %v973 = vadd.f32 %v368, %v972
        %v974 = vpop.f32.mrf.mxu0
        %v975 = vpop.f32.mrf.mxu0
        %v976 = vadd.f32 %v368, %v975
        %v977 = vpop.f32.mrf.mxu0
        %978 = vmatprep.mubr.bf16.mxu0 0
        %979 = vmatmul.mubr.bf16.gmra.mxu0 %v644
        %v980 = vpop.f32.mrf.mxu0
        %v981 = vadd.f32 %v368, %v980
        %v982 = vpop.f32.mrf.mxu0
        %v983 = vpop.f32.mrf.mxu0
        %v984 = vadd.f32 %v368, %v983
        %v985 = vpop.f32.mrf.mxu0
        %986 = vmatprep.mubr.bf16.mxu0 0
        %987 = vmatmul.mubr.bf16.gmra.mxu0 %v645
        %v988 = vpop.f32.mrf.mxu0
        %v989 = vadd.f32 %v368, %v988
        %v990 = vpop.f32.mrf.mxu0
        %v991 = vpop.f32.mrf.mxu0
        %v992 = vadd.f32 %v368, %v991
        %v993 = vpop.f32.mrf.mxu0
        %994 = vmatprep.mubr.bf16.mxu0 0
        %995 = vmatmul.mubr.bf16.gmra.mxu0 %v646
        %v996 = vpop.f32.mrf.mxu0
        %v997 = vadd.f32 %v368, %v996
        %v998 = vpop.f32.mrf.mxu0
        %v999 = vpop.f32.mrf.mxu0
        %v1000 = vadd.f32 %v368, %v999
        %v1001 = vpop.f32.mrf.mxu0
        %1002 = vmatprep.mubr.bf16.mxu0 0
        %1003 = vmatmul.mubr.bf16.gmra.mxu0 %v647
        %v1004 = vpop.f32.mrf.mxu0
        %v1005 = vadd.f32 %v368, %v1004
        %v1006 = vpop.f32.mrf.mxu0
        %v1007 = vpop.f32.mrf.mxu0
        %v1008 = vadd.f32 %v368, %v1007
        %v1009 = vpop.f32.mrf.mxu0
        %1010 = vmatprep.mubr.bf16.mxu0 0
        %1011 = vmatmul.mubr.bf16.gmra.mxu0 %v648
        %v1012 = vpop.f32.mrf.mxu0
        %v1013 = vadd.f32 %v368, %v1012
        %v1014 = vpop.f32.mrf.mxu0
        %v1015 = vpop.f32.mrf.mxu0
        %v1016 = vadd.f32 %v368, %v1015
        %v1017 = vpop.f32.mrf.mxu0
        %1018 = vmatprep.mubr.bf16.mxu0 0
        %1019 = vmatmul.mubr.bf16.gmra.mxu0 %v649
        %v1020 = vpop.f32.mrf.mxu0
        %v1021 = vadd.f32 %v368, %v1020
        %v1022 = vpop.f32.mrf.mxu0
        %v1023 = vpop.f32.mrf.mxu0
        %v1024 = vadd.f32 %v368, %v1023
        %v1025 = vpop.f32.mrf.mxu0
        %1026 = vmatprep.mubr.bf16.mxu0 0
        %1027 = vmatmul.mubr.bf16.gmra.mxu0 %v650
        %v1028 = vpop.f32.mrf.mxu0
        %v1029 = vadd.f32 %v368, %v1028
        %v1030 = vpop.f32.mrf.mxu0
        %v1031 = vpop.f32.mrf.mxu0
        %v1032 = vadd.f32 %v368, %v1031
        %v1033 = vpop.f32.mrf.mxu0
        %1034 = vmatprep.mubr.bf16.mxu0 0
        %1035 = vmatmul.mubr.bf16.gmra.mxu0 %v651
        %v1036 = vpop.f32.mrf.mxu0
        %v1037 = vadd.f32 %v368, %v1036
        %v1038 = vpop.f32.mrf.mxu0
        %v1039 = vpop.f32.mrf.mxu0
        %v1040 = vadd.f32 %v368, %v1039
        %v1041 = vpop.f32.mrf.mxu0
        %1042 = vmatprep.mubr.bf16.mxu0 0
        %1043 = vmatmul.mubr.bf16.gmra.mxu0 %v652
        %v1044 = vpop.f32.mrf.mxu0
        %v1045 = vadd.f32 %v368, %v1044
        %v1046 = vpop.f32.mrf.mxu0
        %v1047 = vpop.f32.mrf.mxu0
        %v1048 = vadd.f32 %v368, %v1047
        %v1049 = vpop.f32.mrf.mxu0
        %1050 = vmatprep.mubr.bf16.mxu0 0
        %1051 = vmatmul.mubr.bf16.gmra.mxu0 %v653
        %v1052 = vpop.f32.mrf.mxu0
        %v1053 = vadd.f32 %v368, %v1052
        %v1054 = vpop.f32.mrf.mxu0
        %v1055 = vpop.f32.mrf.mxu0
        %v1056 = vadd.f32 %v368, %v1055
        %v1057 = vpop.f32.mrf.mxu0
        %1058 = vmatprep.mubr.bf16.mxu0 0
        %1059 = vmatmul.mubr.bf16.gmra.mxu0 %v654
        %v1060 = vpop.f32.mrf.mxu0
        %v1061 = vadd.f32 %v368, %v1060
        %v1062 = vpop.f32.mrf.mxu0
        %v1063 = vpop.f32.mrf.mxu0
        %v1064 = vadd.f32 %v368, %v1063
        %v1065 = vpop.f32.mrf.mxu0
        %1066 = vmatprep.mubr.bf16.mxu0 0
        %1067 = vmatmul.mubr.bf16.gmra.mxu0 %v655
        %v1068 = vpop.f32.mrf.mxu0
        %v1069 = vadd.f32 %v368, %v1068
        %v1070 = vpop.f32.mrf.mxu0
        %v1071 = vpop.f32.mrf.mxu0
        %v1072 = vadd.f32 %v368, %v1071
        %v1073 = vpop.f32.mrf.mxu0
        %1074 = vmatprep.mubr.bf16.mxu0 0
        %1075 = vmatmul.mubr.bf16.gmra.mxu0 %v656
        %v1076 = vpop.f32.mrf.mxu0
        %v1077 = vadd.f32 %v368, %v1076
        %v1078 = vpop.f32.mrf.mxu0
        %v1079 = vpop.f32.mrf.mxu0
        %v1080 = vadd.f32 %v368, %v1079
        %v1081 = vpop.f32.mrf.mxu0
        %1082 = vmatprep.mubr.bf16.mxu0 0
        %1083 = vmatmul.mubr.bf16.gmra.mxu0 %v657
        %v1084 = vpop.f32.mrf.mxu0
        %v1085 = vadd.f32 %v368, %v1084
        %v1086 = vpop.f32.mrf.mxu0
        %v1087 = vpop.f32.mrf.mxu0
        %v1088 = vadd.f32 %v368, %v1087
        %v1089 = vpop.f32.mrf.mxu0
        %1090 = vmatprep.mubr.bf16.mxu0 0
        %1091 = vmatmul.mubr.bf16.gmra.mxu0 %v658
        %v1092 = vpop.f32.mrf.mxu0
        %v1093 = vadd.f32 %v368, %v1092
        %v1094 = vpop.f32.mrf.mxu0
        %v1095 = vpop.f32.mrf.mxu0
        %v1096 = vadd.f32 %v368, %v1095
        %v1097 = vpop.f32.mrf.mxu0
        %1098 = vmatprep.mubr.bf16.mxu0 0
        %1099 = vmatmul.mubr.bf16.gmra.mxu0 %v659
        %v1100 = vpop.f32.mrf.mxu0
        %v1101 = vadd.f32 %v368, %v1100
        %v1102 = vpop.f32.mrf.mxu0
        %v1103 = vpop.f32.mrf.mxu0
        %v1104 = vadd.f32 %v368, %v1103
        %v1105 = vpop.f32.mrf.mxu0
        %1106 = vmatprep.mubr.bf16.mxu0 0
        %1107 = vmatmul.mubr.bf16.gmra.mxu0 %v660
        %v1108 = vpop.f32.mrf.mxu0
        %v1109 = vadd.f32 %v368, %v1108
        %v1110 = vpop.f32.mrf.mxu0
        %v1111 = vpop.f32.mrf.mxu0
        %v1112 = vadd.f32 %v368, %v1111
        %v1113 = vpop.f32.mrf.mxu0
        %1114 = vmatprep.mubr.bf16.mxu0 0
        %1115 = vmatmul.mubr.bf16.gmra.mxu0 %v661
        %v1116 = vpop.f32.mrf.mxu0
        %v1117 = vadd.f32 %v368, %v1116
        %v1118 = vpop.f32.mrf.mxu0
        %v1119 = vpop.f32.mrf.mxu0
        %v1120 = vadd.f32 %v368, %v1119
        %v1121 = vpop.f32.mrf.mxu0
        %1122 = vmatprep.mubr.bf16.mxu0 0
        %1123 = vmatmul.mubr.bf16.gmra.mxu0 %v662
        %v1124 = vpop.f32.mrf.mxu0
        %v1125 = vadd.f32 %v368, %v1124
        %v1126 = vpop.f32.mrf.mxu0
        %v1127 = vpop.f32.mrf.mxu0
        %v1128 = vadd.f32 %v368, %v1127
        %v1129 = vpop.f32.mrf.mxu0
        %1130 = vmatprep.mubr.bf16.mxu0 0
        %1131 = vmatmul.mubr.bf16.gmra.mxu0 %v663
        %v1132 = vpop.f32.mrf.mxu0
        %v1133 = vadd.f32 %v368, %v1132
        %v1134 = vpop.f32.mrf.mxu0
        %v1135 = vpop.f32.mrf.mxu0
        %v1136 = vadd.f32 %v368, %v1135
        %v1137 = vpop.f32.mrf.mxu0
        %1138 = vmatprep.mubr.bf16.mxu0 0
        %1139 = vmatmul.mubr.bf16.gmra.mxu0 %v664
        %v1140 = vpop.f32.mrf.mxu0
        %v1141 = vadd.f32 %v368, %v1140
        %v1142 = vpop.f32.mrf.mxu0
        %v1143 = vpop.f32.mrf.mxu0
        %v1144 = vadd.f32 %v368, %v1143
        %v1145 = vpop.f32.mrf.mxu0
        %1146 = vmatprep.mubr.bf16.mxu0 0
        %1147 = vmatmul.mubr.bf16.gmra.mxu0 %v665
        %v1148 = vpop.f32.mrf.mxu0
        %v1149 = vadd.f32 %v368, %v1148
        %v1150 = vpop.f32.mrf.mxu0
        %v1151 = vpop.f32.mrf.mxu0
        %v1152 = vadd.f32 %v368, %v1151
        %v1153 = vpop.f32.mrf.mxu0
        %1154 = vmatprep.mubr.bf16.mxu0 0
        %1155 = vmatmul.mubr.bf16.gmra.mxu0 %v666
        %v1156 = vpop.f32.mrf.mxu0
        %v1157 = vadd.f32 %v368, %v1156
        %v1158 = vpop.f32.mrf.mxu0
        %v1159 = vpop.f32.mrf.mxu0
        %v1160 = vadd.f32 %v368, %v1159
        %v1161 = vpop.f32.mrf.mxu0
        %1162 = vmatprep.mubr.bf16.mxu0 0
        %1163 = vmatmul.mubr.bf16.gmra.mxu0 %v667
        %v1164 = vpop.f32.mrf.mxu0
        %v1165 = vadd.f32 %v368, %v1164
        %v1166 = vpop.f32.mrf.mxu0
        %v1167 = vpop.f32.mrf.mxu0
        %v1168 = vadd.f32 %v368, %v1167
        %v1169 = vpop.f32.mrf.mxu0
        %1170 = vmatprep.mubr.bf16.mxu0 0
        %1171 = vmatmul.mubr.bf16.gmra.mxu0 %v668
        %v1172 = vpop.f32.mrf.mxu0
        %v1173 = vadd.f32 %v368, %v1172
        %v1174 = vpop.f32.mrf.mxu0
        %v1175 = vpop.f32.mrf.mxu0
        %v1176 = vadd.f32 %v368, %v1175
        %v1177 = vpop.f32.mrf.mxu0
        %1178 = vmatprep.mubr.bf16.mxu0 0
        %1179 = vmatmul.mubr.bf16.gmra.mxu0 %v669
        %v1180 = vpop.f32.mrf.mxu0
        %v1181 = vadd.f32 %v368, %v1180
        %v1182 = vpop.f32.mrf.mxu0
        %v1183 = vpop.f32.mrf.mxu0
        %v1184 = vadd.f32 %v368, %v1183
        %v1185 = vpop.f32.mrf.mxu0
        %1186 = vmatprep.mubr.bf16.mxu0 0
        %1187 = vmatmul.mubr.bf16.gmra.mxu0 %v670
        %v1188 = vpop.f32.mrf.mxu0
        %v1189 = vadd.f32 %v368, %v1188
        %v1190 = vpop.f32.mrf.mxu0
        %v1191 = vpop.f32.mrf.mxu0
        %v1192 = vadd.f32 %v368, %v1191
        %v1193 = vpop.f32.mrf.mxu0
        %1194 = vmatprep.mubr.bf16.mxu0 0
        %1195 = vmatmul.mubr.bf16.gmra.mxu0 %v671
        %v1196 = vpop.f32.mrf.mxu0
        %v1197 = vadd.f32 %v368, %v1196
        %v1198 = vpop.f32.mrf.mxu0
        %v1199 = vpop.f32.mrf.mxu0
        %v1200 = vadd.f32 %v368, %v1199
        %v1201 = vpop.f32.mrf.mxu0
        %1202 = vmatprep.mubr.bf16.mxu0 0
        %1203 = vmatmul.mubr.bf16.gmra.mxu0 %v672
        %v1204 = vpop.f32.mrf.mxu0
        %v1205 = vadd.f32 %v368, %v1204
        %v1206 = vpop.f32.mrf.mxu0
        %v1207 = vpop.f32.mrf.mxu0
        %v1208 = vadd.f32 %v368, %v1207
        %v1209 = vpop.f32.mrf.mxu0
        %1210 = vmatprep.mubr.bf16.mxu0 0
        %1211 = vmatmul.mubr.bf16.gmra.mxu0 %v673
        %v1212 = vpop.f32.mrf.mxu0
        %v1213 = vadd.f32 %v368, %v1212
        %v1214 = vpop.f32.mrf.mxu0
        %v1215 = vpop.f32.mrf.mxu0
        %v1216 = vadd.f32 %v368, %v1215
        %v1217 = vpop.f32.mrf.mxu0
        %1218 = vmatprep.mubr.bf16.mxu0 0
        %1219 = vmatmul.mubr.bf16.gmra.mxu0 %v674
        %v1220 = vpop.f32.mrf.mxu0
        %v1221 = vadd.f32 %v368, %v1220
        %v1222 = vpop.f32.mrf.mxu0
        %v1223 = vpop.f32.mrf.mxu0
        %v1224 = vadd.f32 %v368, %v1223
        %v1225 = vpop.f32.mrf.mxu0
        %1226 = vmatprep.mubr.bf16.mxu0 0
        %1227 = vmatmul.mubr.bf16.gmra.mxu0 %v675
        %v1228 = vpop.f32.mrf.mxu0
        %v1229 = vadd.f32 %v368, %v1228
        %v1230 = vpop.f32.mrf.mxu0
        %v1231 = vpop.f32.mrf.mxu0
        %v1232 = vadd.f32 %v368, %v1231
        %v1233 = vpop.f32.mrf.mxu0
        %1234 = vmatprep.mubr.bf16.mxu0 0
        %1235 = vmatmul.mubr.bf16.gmra.mxu0 %v676
        %v1236 = vpop.f32.mrf.mxu0
        %v1237 = vadd.f32 %v368, %v1236
        %v1238 = vpop.f32.mrf.mxu0
        %v1239 = vpop.f32.mrf.mxu0
        %v1240 = vadd.f32 %v368, %v1239
        %v1241 = vpop.f32.mrf.mxu0
        %1242 = vmatprep.mubr.bf16.mxu0 0
        %1243 = vmatmul.mubr.bf16.gmra.mxu0 %v677
        %v1244 = vpop.f32.mrf.mxu0
        %v1245 = vadd.f32 %v368, %v1244
        %v1246 = vpop.f32.mrf.mxu0
        %v1247 = vpop.f32.mrf.mxu0
        %v1248 = vadd.f32 %v368, %v1247
        %v1249 = vpop.f32.mrf.mxu0
        %1250 = vmatprep.mubr.bf16.mxu0 0
        %1251 = vmatmul.mubr.bf16.gmra.mxu0 %v678
        %v1252 = vpop.f32.mrf.mxu0
        %v1253 = vadd.f32 %v368, %v1252
        %v1254 = vpop.f32.mrf.mxu0
        %v1255 = vpop.f32.mrf.mxu0
        %v1256 = vadd.f32 %v368, %v1255
        %v1257 = vpop.f32.mrf.mxu0
        %1258 = vmatprep.mubr.bf16.mxu0 0
        %1259 = vmatmul.mubr.bf16.gmra.mxu0 %v679
        %v1260 = vpop.f32.mrf.mxu0
        %v1261 = vadd.f32 %v368, %v1260
        %v1262 = vpop.f32.mrf.mxu0
        %v1263 = vpop.f32.mrf.mxu0
        %v1264 = vadd.f32 %v368, %v1263
        %v1265 = vpop.f32.mrf.mxu0
        %1266 = vmatprep.mubr.bf16.mxu0 0
        %1267 = vmatmul.mubr.bf16.gmra.mxu0 %v680
        %v1268 = vpop.f32.mrf.mxu0
        %v1269 = vadd.f32 %v368, %v1268
        %v1270 = vpop.f32.mrf.mxu0
        %v1271 = vpop.f32.mrf.mxu0
        %v1272 = vadd.f32 %v368, %v1271
        %v1273 = vpop.f32.mrf.mxu0
        %1274 = vmatprep.mubr.bf16.mxu0 0
        %1275 = vmatmul.mubr.bf16.gmra.mxu0 %v681
        %v1276 = vpop.f32.mrf.mxu0
        %v1277 = vadd.f32 %v368, %v1276
        %v1278 = vpop.f32.mrf.mxu0
        %v1279 = vpop.f32.mrf.mxu0
        %v1280 = vadd.f32 %v368, %v1279
        %v1281 = vpop.f32.mrf.mxu0
        %1282 = vmatprep.mubr.bf16.mxu0 0
        %1283 = vmatmul.mubr.bf16.gmra.mxu0 %v682
        %v1284 = vpop.f32.mrf.mxu0
        %v1285 = vadd.f32 %v368, %v1284
        %v1286 = vpop.f32.mrf.mxu0
        %v1287 = vpop.f32.mrf.mxu0
        %v1288 = vadd.f32 %v368, %v1287
        %v1289 = vpop.f32.mrf.mxu0
        %1290 = vmatprep.mubr.bf16.mxu0 0
        %1291 = vmatmul.mubr.bf16.gmra.mxu0 %v683
        %v1292 = vpop.f32.mrf.mxu0
        %v1293 = vadd.f32 %v368, %v1292
        %v1294 = vpop.f32.mrf.mxu0
        %v1295 = vpop.f32.mrf.mxu0
        %v1296 = vadd.f32 %v368, %v1295
        %v1297 = vpop.f32.mrf.mxu0
        %1298 = vmatprep.mubr.bf16.mxu0 0
        %1299 = vmatmul.mubr.bf16.gmra.mxu0 %v684
        %v1300 = vpop.f32.mrf.mxu0
        %v1301 = vadd.f32 %v368, %v1300
        %v1302 = vpop.f32.mrf.mxu0
        %v1303 = vpop.f32.mrf.mxu0
        %v1304 = vadd.f32 %v368, %v1303
        %v1305 = vpop.f32.mrf.mxu0
        %1306 = vmatprep.mubr.bf16.mxu0 0
        %1307 = vmatmul.mubr.bf16.gmra.mxu0 %v685
        %v1308 = vpop.f32.mrf.mxu0
        %v1309 = vadd.f32 %v368, %v1308
        %v1310 = vpop.f32.mrf.mxu0
        %v1311 = vpop.f32.mrf.mxu0
        %v1312 = vadd.f32 %v368, %v1311
        %v1313 = vpop.f32.mrf.mxu0
        %1314 = vmatprep.mubr.bf16.mxu0 0
        %1315 = vmatmul.mubr.bf16.gmra.mxu0 %v686
        %v1316 = vpop.f32.mrf.mxu0
        %v1317 = vadd.f32 %v368, %v1316
        %v1318 = vpop.f32.mrf.mxu0
        %v1319 = vpop.f32.mrf.mxu0
        %v1320 = vadd.f32 %v368, %v1319
        %v1321 = vpop.f32.mrf.mxu0
        %1322 = vmatprep.mubr.bf16.mxu0 0
        %1323 = vmatmul.mubr.bf16.gmra.mxu0 %v687
        %v1324 = vpop.f32.mrf.mxu0
        %v1325 = vadd.f32 %v368, %v1324
        %v1326 = vpop.f32.mrf.mxu0
        %v1327 = vpop.f32.mrf.mxu0
        %v1328 = vadd.f32 %v368, %v1327
        %v1329 = vpop.f32.mrf.mxu0
        %1330 = vmatprep.mubr.bf16.mxu0 0
        %1331 = vmatmul.mubr.bf16.gmra.mxu0 %v688
        %v1332 = vpop.f32.mrf.mxu0
        %v1333 = vadd.f32 %v368, %v1332
        %v1334 = vpop.f32.mrf.mxu0
        %v1335 = vpop.f32.mrf.mxu0
        %v1336 = vadd.f32 %v368, %v1335
        %v1337 = vpop.f32.mrf.mxu0
        %1338 = vmatprep.mubr.bf16.mxu0 0
        %1339 = vmatmul.mubr.bf16.gmra.mxu0 %v689
        %v1340 = vpop.f32.mrf.mxu0
        %v1341 = vadd.f32 %v368, %v1340
        %v1342 = vpop.f32.mrf.mxu0
        %v1343 = vpop.f32.mrf.mxu0
        %v1344 = vadd.f32 %v368, %v1343
        %v1345 = vpop.f32.mrf.mxu0
        %1346 = vdwg.mxu0
        %vm1347 = vcmp.gt.f32.partialorder %v837, 0.0
        %vm1348 = vcmp.gt.f32.partialorder %v840, 0.0
        %vm1349 = vcmp.gt.f32.partialorder %v845, 0.0
        %vm1350 = vcmp.gt.f32.partialorder %v848, 0.0
        %vm1351 = vcmp.gt.f32.partialorder %v853, 0.0
        %vm1352 = vcmp.gt.f32.partialorder %v856, 0.0
        %vm1353 = vcmp.gt.f32.partialorder %v861, 0.0
        %vm1354 = vcmp.gt.f32.partialorder %v864, 0.0
        %vm1355 = vcmp.gt.f32.partialorder %v869, 0.0
        %vm1356 = vcmp.gt.f32.partialorder %v872, 0.0
        %vm1357 = vcmp.gt.f32.partialorder %v877, 0.0
        %vm1358 = vcmp.gt.f32.partialorder %v880, 0.0
        %vm1359 = vcmp.gt.f32.partialorder %v885, 0.0
        %vm1360 = vcmp.gt.f32.partialorder %v888, 0.0
        %vm1361 = vcmp.gt.f32.partialorder %v893, 0.0
        %vm1362 = vcmp.gt.f32.partialorder %v896, 0.0
        %vm1363 = vcmp.gt.f32.partialorder %v901, 0.0
        %vm1364 = vcmp.gt.f32.partialorder %v904, 0.0
        %vm1365 = vcmp.gt.f32.partialorder %v909, 0.0
        %vm1366 = vcmp.gt.f32.partialorder %v912, 0.0
        %vm1367 = vcmp.gt.f32.partialorder %v917, 0.0
        %vm1368 = vcmp.gt.f32.partialorder %v920, 0.0
        %vm1369 = vcmp.gt.f32.partialorder %v925, 0.0
        %vm1370 = vcmp.gt.f32.partialorder %v928, 0.0
        %vm1371 = vcmp.gt.f32.partialorder %v933, 0.0
        %vm1372 = vcmp.gt.f32.partialorder %v936, 0.0
        %vm1373 = vcmp.gt.f32.partialorder %v941, 0.0
        %vm1374 = vcmp.gt.f32.partialorder %v944, 0.0
        %vm1375 = vcmp.gt.f32.partialorder %v949, 0.0
        %vm1376 = vcmp.gt.f32.partialorder %v952, 0.0
        %vm1377 = vcmp.gt.f32.partialorder %v957, 0.0
        %vm1378 = vcmp.gt.f32.partialorder %v960, 0.0
        %vm1379 = vcmp.gt.f32.partialorder %v965, 0.0
        %vm1380 = vcmp.gt.f32.partialorder %v968, 0.0
        %vm1381 = vcmp.gt.f32.partialorder %v973, 0.0
        %vm1382 = vcmp.gt.f32.partialorder %v976, 0.0
        %vm1383 = vcmp.gt.f32.partialorder %v981, 0.0
        %vm1384 = vcmp.gt.f32.partialorder %v984, 0.0
        %vm1385 = vcmp.gt.f32.partialorder %v989, 0.0
        %vm1386 = vcmp.gt.f32.partialorder %v992, 0.0
        %vm1387 = vcmp.gt.f32.partialorder %v997, 0.0
        %vm1388 = vcmp.gt.f32.partialorder %v1000, 0.0
        %vm1389 = vcmp.gt.f32.partialorder %v1005, 0.0
        %vm1390 = vcmp.gt.f32.partialorder %v1008, 0.0
        %vm1391 = vcmp.gt.f32.partialorder %v1013, 0.0
        %vm1392 = vcmp.gt.f32.partialorder %v1016, 0.0
        %vm1393 = vcmp.gt.f32.partialorder %v1021, 0.0
        %vm1394 = vcmp.gt.f32.partialorder %v1024, 0.0
        %vm1395 = vcmp.gt.f32.partialorder %v1029, 0.0
        %vm1396 = vcmp.gt.f32.partialorder %v1032, 0.0
        %vm1397 = vcmp.gt.f32.partialorder %v1037, 0.0
        %vm1398 = vcmp.gt.f32.partialorder %v1040, 0.0
        %vm1399 = vcmp.gt.f32.partialorder %v1045, 0.0
        %vm1400 = vcmp.gt.f32.partialorder %v1048, 0.0
        %vm1401 = vcmp.gt.f32.partialorder %v1053, 0.0
        %vm1402 = vcmp.gt.f32.partialorder %v1056, 0.0
        %vm1403 = vcmp.gt.f32.partialorder %v1061, 0.0
        %vm1404 = vcmp.gt.f32.partialorder %v1064, 0.0
        %vm1405 = vcmp.gt.f32.partialorder %v1069, 0.0
        %vm1406 = vcmp.gt.f32.partialorder %v1072, 0.0
        %vm1407 = vcmp.gt.f32.partialorder %v1077, 0.0
        %vm1408 = vcmp.gt.f32.partialorder %v1080, 0.0
        %vm1409 = vcmp.gt.f32.partialorder %v1085, 0.0
        %vm1410 = vcmp.gt.f32.partialorder %v1088, 0.0
        %vm1411 = vcmp.gt.f32.partialorder %v1093, 0.0
        %vm1412 = vcmp.gt.f32.partialorder %v1096, 0.0
        %vm1413 = vcmp.gt.f32.partialorder %v1101, 0.0
        %vm1414 = vcmp.gt.f32.partialorder %v1104, 0.0
        %vm1415 = vcmp.gt.f32.partialorder %v1109, 0.0
        %vm1416 = vcmp.gt.f32.partialorder %v1112, 0.0
        %vm1417 = vcmp.gt.f32.partialorder %v1117, 0.0
        %vm1418 = vcmp.gt.f32.partialorder %v1120, 0.0
        %vm1419 = vcmp.gt.f32.partialorder %v1125, 0.0
        %vm1420 = vcmp.gt.f32.partialorder %v1128, 0.0
        %vm1421 = vcmp.gt.f32.partialorder %v1133, 0.0
        %vm1422 = vcmp.gt.f32.partialorder %v1136, 0.0
        %vm1423 = vcmp.gt.f32.partialorder %v1141, 0.0
        %vm1424 = vcmp.gt.f32.partialorder %v1144, 0.0
        %vm1425 = vcmp.gt.f32.partialorder %v1149, 0.0
        %vm1426 = vcmp.gt.f32.partialorder %v1152, 0.0
        %vm1427 = vcmp.gt.f32.partialorder %v1157, 0.0
        %vm1428 = vcmp.gt.f32.partialorder %v1160, 0.0
        %vm1429 = vcmp.gt.f32.partialorder %v1165, 0.0
        %vm1430 = vcmp.gt.f32.partialorder %v1168, 0.0
        %vm1431 = vcmp.gt.f32.partialorder %v1173, 0.0
        %vm1432 = vcmp.gt.f32.partialorder %v1176, 0.0
        %vm1433 = vcmp.gt.f32.partialorder %v1181, 0.0
        %vm1434 = vcmp.gt.f32.partialorder %v1184, 0.0
        %vm1435 = vcmp.gt.f32.partialorder %v1189, 0.0
        %vm1436 = vcmp.gt.f32.partialorder %v1192, 0.0
        %vm1437 = vcmp.gt.f32.partialorder %v1197, 0.0
        %vm1438 = vcmp.gt.f32.partialorder %v1200, 0.0
        %vm1439 = vcmp.gt.f32.partialorder %v1205, 0.0
        %vm1440 = vcmp.gt.f32.partialorder %v1208, 0.0
        %vm1441 = vcmp.gt.f32.partialorder %v1213, 0.0
        %vm1442 = vcmp.gt.f32.partialorder %v1216, 0.0
        %vm1443 = vcmp.gt.f32.partialorder %v1221, 0.0
        %vm1444 = vcmp.gt.f32.partialorder %v1224, 0.0
        %vm1445 = vcmp.gt.f32.partialorder %v1229, 0.0
        %vm1446 = vcmp.gt.f32.partialorder %v1232, 0.0
        %vm1447 = vcmp.gt.f32.partialorder %v1237, 0.0
        %vm1448 = vcmp.gt.f32.partialorder %v1240, 0.0
        %vm1449 = vcmp.gt.f32.partialorder %v1245, 0.0
        %vm1450 = vcmp.gt.f32.partialorder %v1248, 0.0
        %vm1451 = vcmp.gt.f32.partialorder %v1253, 0.0
        %vm1452 = vcmp.gt.f32.partialorder %v1256, 0.0
        %vm1453 = vcmp.gt.f32.partialorder %v1261, 0.0
        %vm1454 = vcmp.gt.f32.partialorder %v1264, 0.0
        %vm1455 = vcmp.gt.f32.partialorder %v1269, 0.0
        %vm1456 = vcmp.gt.f32.partialorder %v1272, 0.0
        %vm1457 = vcmp.gt.f32.partialorder %v1277, 0.0
        %vm1458 = vcmp.gt.f32.partialorder %v1280, 0.0
        %vm1459 = vcmp.gt.f32.partialorder %v1285, 0.0
        %vm1460 = vcmp.gt.f32.partialorder %v1288, 0.0
        %vm1461 = vcmp.gt.f32.partialorder %v1293, 0.0
        %vm1462 = vcmp.gt.f32.partialorder %v1296, 0.0
        %vm1463 = vcmp.gt.f32.partialorder %v1301, 0.0
        %vm1464 = vcmp.gt.f32.partialorder %v1304, 0.0
        %vm1465 = vcmp.gt.f32.partialorder %v1309, 0.0
        %vm1466 = vcmp.gt.f32.partialorder %v1312, 0.0
        %vm1467 = vcmp.gt.f32.partialorder %v1317, 0.0
        %vm1468 = vcmp.gt.f32.partialorder %v1320, 0.0
        %vm1469 = vcmp.gt.f32.partialorder %v1325, 0.0
        %vm1470 = vcmp.gt.f32.partialorder %v1328, 0.0
        %vm1471 = vcmp.gt.f32.partialorder %v1333, 0.0
        %vm1472 = vcmp.gt.f32.partialorder %v1336, 0.0
        %vm1473 = vcmp.gt.f32.partialorder %v1341, 0.0
        %vm1474 = vcmp.gt.f32.partialorder %v1344, 0.0
        %v1475 = vmin.f32 %v837, 0.0
        %v1476 = vmin.f32 %v840, 0.0
        %v1477 = vmin.f32 %v845, 0.0
        %v1478 = vmin.f32 %v848, 0.0
        %v1479 = vmin.f32 %v853, 0.0
        %v1480 = vmin.f32 %v856, 0.0
        %v1481 = vmin.f32 %v861, 0.0
        %v1482 = vmin.f32 %v864, 0.0
        %v1483 = vmin.f32 %v869, 0.0
        %v1484 = vmin.f32 %v872, 0.0
        %v1485 = vmin.f32 %v877, 0.0
        %v1486 = vmin.f32 %v880, 0.0
        %v1487 = vmin.f32 %v885, 0.0
        %v1488 = vmin.f32 %v888, 0.0
        %v1489 = vmin.f32 %v893, 0.0
        %v1490 = vmin.f32 %v896, 0.0
        %v1491 = vmin.f32 %v901, 0.0
        %v1492 = vmin.f32 %v904, 0.0
        %v1493 = vmin.f32 %v909, 0.0
        %v1494 = vmin.f32 %v912, 0.0
        %v1495 = vmin.f32 %v917, 0.0
        %v1496 = vmin.f32 %v920, 0.0
        %v1497 = vmin.f32 %v925, 0.0
        %v1498 = vmin.f32 %v928, 0.0
        %v1499 = vmin.f32 %v933, 0.0
        %v1500 = vmin.f32 %v936, 0.0
        %v1501 = vmin.f32 %v941, 0.0
        %v1502 = vmin.f32 %v944, 0.0
        %v1503 = vmin.f32 %v949, 0.0
        %v1504 = vmin.f32 %v952, 0.0
        %v1505 = vmin.f32 %v957, 0.0
        %v1506 = vmin.f32 %v960, 0.0
        %v1507 = vmin.f32 %v965, 0.0
        %v1508 = vmin.f32 %v968, 0.0
        %v1509 = vmin.f32 %v973, 0.0
        %v1510 = vmin.f32 %v976, 0.0
        %v1511 = vmin.f32 %v981, 0.0
        %v1512 = vmin.f32 %v984, 0.0
        %v1513 = vmin.f32 %v989, 0.0
        %v1514 = vmin.f32 %v992, 0.0
        %v1515 = vmin.f32 %v997, 0.0
        %v1516 = vmin.f32 %v1000, 0.0
        %v1517 = vmin.f32 %v1005, 0.0
        %v1518 = vmin.f32 %v1008, 0.0
        %v1519 = vmin.f32 %v1013, 0.0
        %v1520 = vmin.f32 %v1016, 0.0
        %v1521 = vmin.f32 %v1021, 0.0
        %v1522 = vmin.f32 %v1024, 0.0
        %v1523 = vmin.f32 %v1029, 0.0
        %v1524 = vmin.f32 %v1032, 0.0
        %v1525 = vmin.f32 %v1037, 0.0
        %v1526 = vmin.f32 %v1040, 0.0
        %v1527 = vmin.f32 %v1045, 0.0
        %v1528 = vmin.f32 %v1048, 0.0
        %v1529 = vmin.f32 %v1053, 0.0
        %v1530 = vmin.f32 %v1056, 0.0
        %v1531 = vmin.f32 %v1061, 0.0
        %v1532 = vmin.f32 %v1064, 0.0
        %v1533 = vmin.f32 %v1069, 0.0
        %v1534 = vmin.f32 %v1072, 0.0
        %v1535 = vmin.f32 %v1077, 0.0
        %v1536 = vmin.f32 %v1080, 0.0
        %v1537 = vmin.f32 %v1085, 0.0
        %v1538 = vmin.f32 %v1088, 0.0
        %v1539 = vmin.f32 %v1093, 0.0
        %v1540 = vmin.f32 %v1096, 0.0
        %v1541 = vmin.f32 %v1101, 0.0
        %v1542 = vmin.f32 %v1104, 0.0
        %v1543 = vmin.f32 %v1109, 0.0
        %v1544 = vmin.f32 %v1112, 0.0
        %v1545 = vmin.f32 %v1117, 0.0
        %v1546 = vmin.f32 %v1120, 0.0
        %v1547 = vmin.f32 %v1125, 0.0
        %v1548 = vmin.f32 %v1128, 0.0
        %v1549 = vmin.f32 %v1133, 0.0
        %v1550 = vmin.f32 %v1136, 0.0
        %v1551 = vmin.f32 %v1141, 0.0
        %v1552 = vmin.f32 %v1144, 0.0
        %v1553 = vmin.f32 %v1149, 0.0
        %v1554 = vmin.f32 %v1152, 0.0
        %v1555 = vmin.f32 %v1157, 0.0
        %v1556 = vmin.f32 %v1160, 0.0
        %v1557 = vmin.f32 %v1165, 0.0
        %v1558 = vmin.f32 %v1168, 0.0
        %v1559 = vmin.f32 %v1173, 0.0
        %v1560 = vmin.f32 %v1176, 0.0
        %v1561 = vmin.f32 %v1181, 0.0
        %v1562 = vmin.f32 %v1184, 0.0
        %v1563 = vmin.f32 %v1189, 0.0
        %v1564 = vmin.f32 %v1192, 0.0
        %v1565 = vmin.f32 %v1197, 0.0
        %v1566 = vmin.f32 %v1200, 0.0
        %v1567 = vmin.f32 %v1205, 0.0
        %v1568 = vmin.f32 %v1208, 0.0
        %v1569 = vmin.f32 %v1213, 0.0
        %v1570 = vmin.f32 %v1216, 0.0
        %v1571 = vmin.f32 %v1221, 0.0
        %v1572 = vmin.f32 %v1224, 0.0
        %v1573 = vmin.f32 %v1229, 0.0
        %v1574 = vmin.f32 %v1232, 0.0
        %v1575 = vmin.f32 %v1237, 0.0
        %v1576 = vmin.f32 %v1240, 0.0
        %v1577 = vmin.f32 %v1245, 0.0
        %v1578 = vmin.f32 %v1248, 0.0
        %v1579 = vmin.f32 %v1253, 0.0
        %v1580 = vmin.f32 %v1256, 0.0
        %v1581 = vmin.f32 %v1261, 0.0
        %v1582 = vmin.f32 %v1264, 0.0
        %v1583 = vmin.f32 %v1269, 0.0
        %v1584 = vmin.f32 %v1272, 0.0
        %v1585 = vmin.f32 %v1277, 0.0
        %v1586 = vmin.f32 %v1280, 0.0
        %v1587 = vmin.f32 %v1285, 0.0
        %v1588 = vmin.f32 %v1288, 0.0
        %v1589 = vmin.f32 %v1293, 0.0
        %v1590 = vmin.f32 %v1296, 0.0
        %v1591 = vmin.f32 %v1301, 0.0
        %v1592 = vmin.f32 %v1304, 0.0
        %v1593 = vmin.f32 %v1309, 0.0
        %v1594 = vmin.f32 %v1312, 0.0
        %v1595 = vmin.f32 %v1317, 0.0
        %v1596 = vmin.f32 %v1320, 0.0
        %v1597 = vmin.f32 %v1325, 0.0
        %v1598 = vmin.f32 %v1328, 0.0
        %v1599 = vmin.f32 %v1333, 0.0
        %v1600 = vmin.f32 %v1336, 0.0
        %v1601 = vmin.f32 %v1341, 0.0
        %v1602 = vmin.f32 %v1344, 0.0
        %v1603 = vmul.f32 %v1475, 1.442695
        %v1604 = vpow.pop %v1603
        %v1605 = vmul.f32 %v1476, 1.442695
        %v1606 = vpow.pop %v1605
        %v1607 = vmul.f32 %v1477, 1.442695
        %v1608 = vpow.pop %v1607
        %v1609 = vmul.f32 %v1478, 1.442695
        %v1610 = vpow.pop %v1609
        %v1611 = vmul.f32 %v1479, 1.442695
        %v1612 = vpow.pop %v1611
        %v1613 = vmul.f32 %v1480, 1.442695
        %v1614 = vpow.pop %v1613
        %v1615 = vmul.f32 %v1481, 1.442695
        %v1616 = vpow.pop %v1615
        %v1617 = vmul.f32 %v1482, 1.442695
        %v1618 = vpow.pop %v1617
        %v1619 = vmul.f32 %v1483, 1.442695
        %v1620 = vpow.pop %v1619
        %v1621 = vmul.f32 %v1484, 1.442695
        %v1622 = vpow.pop %v1621
        %v1623 = vmul.f32 %v1485, 1.442695
        %v1624 = vpow.pop %v1623
        %v1625 = vmul.f32 %v1486, 1.442695
        %v1626 = vpow.pop %v1625
        %v1627 = vmul.f32 %v1487, 1.442695
        %v1628 = vpow.pop %v1627
        %v1629 = vmul.f32 %v1488, 1.442695
        %v1630 = vpow.pop %v1629
        %v1631 = vmul.f32 %v1489, 1.442695
        %v1632 = vpow.pop %v1631
        %v1633 = vmul.f32 %v1490, 1.442695
        %v1634 = vpow.pop %v1633
        %v1635 = vmul.f32 %v1491, 1.442695
        %v1636 = vpow.pop %v1635
        %v1637 = vmul.f32 %v1492, 1.442695
        %v1638 = vpow.pop %v1637
        %v1639 = vmul.f32 %v1493, 1.442695
        %v1640 = vpow.pop %v1639
        %v1641 = vmul.f32 %v1494, 1.442695
        %v1642 = vpow.pop %v1641
        %v1643 = vmul.f32 %v1495, 1.442695
        %v1644 = vpow.pop %v1643
        %v1645 = vmul.f32 %v1496, 1.442695
        %v1646 = vpow.pop %v1645
        %v1647 = vmul.f32 %v1497, 1.442695
        %v1648 = vpow.pop %v1647
        %v1649 = vmul.f32 %v1498, 1.442695
        %v1650 = vpow.pop %v1649
        %v1651 = vmul.f32 %v1499, 1.442695
        %v1652 = vpow.pop %v1651
        %v1653 = vmul.f32 %v1500, 1.442695
        %v1654 = vpow.pop %v1653
        %v1655 = vmul.f32 %v1501, 1.442695
        %v1656 = vpow.pop %v1655
        %v1657 = vmul.f32 %v1502, 1.442695
        %v1658 = vpow.pop %v1657
        %v1659 = vmul.f32 %v1503, 1.442695
        %v1660 = vpow.pop %v1659
        %v1661 = vmul.f32 %v1504, 1.442695
        %v1662 = vpow.pop %v1661
        %v1663 = vmul.f32 %v1505, 1.442695
        %v1664 = vpow.pop %v1663
        %v1665 = vmul.f32 %v1506, 1.442695
        %v1666 = vpow.pop %v1665
        %v1667 = vmul.f32 %v1507, 1.442695
        %v1668 = vpow.pop %v1667
        %v1669 = vmul.f32 %v1508, 1.442695
        %v1670 = vpow.pop %v1669
        %v1671 = vmul.f32 %v1509, 1.442695
        %v1672 = vpow.pop %v1671
        %v1673 = vmul.f32 %v1510, 1.442695
        %v1674 = vpow.pop %v1673
        %v1675 = vmul.f32 %v1511, 1.442695
        %v1676 = vpow.pop %v1675
        %v1677 = vmul.f32 %v1512, 1.442695
        %v1678 = vpow.pop %v1677
        %v1679 = vmul.f32 %v1513, 1.442695
        %v1680 = vpow.pop %v1679
        %v1681 = vmul.f32 %v1514, 1.442695
        %v1682 = vpow.pop %v1681
        %v1683 = vmul.f32 %v1515, 1.442695
        %v1684 = vpow.pop %v1683
        %v1685 = vmul.f32 %v1516, 1.442695
        %v1686 = vpow.pop %v1685
        %v1687 = vmul.f32 %v1517, 1.442695
        %v1688 = vpow.pop %v1687
        %v1689 = vmul.f32 %v1518, 1.442695
        %v1690 = vpow.pop %v1689
        %v1691 = vmul.f32 %v1519, 1.442695
        %v1692 = vpow.pop %v1691
        %v1693 = vmul.f32 %v1520, 1.442695
        %v1694 = vpow.pop %v1693
        %v1695 = vmul.f32 %v1521, 1.442695
        %v1696 = vpow.pop %v1695
        %v1697 = vmul.f32 %v1522, 1.442695
        %v1698 = vpow.pop %v1697
        %v1699 = vmul.f32 %v1523, 1.442695
        %v1700 = vpow.pop %v1699
        %v1701 = vmul.f32 %v1524, 1.442695
        %v1702 = vpow.pop %v1701
        %v1703 = vmul.f32 %v1525, 1.442695
        %v1704 = vpow.pop %v1703
        %v1705 = vmul.f32 %v1526, 1.442695
        %v1706 = vpow.pop %v1705
        %v1707 = vmul.f32 %v1527, 1.442695
        %v1708 = vpow.pop %v1707
        %v1709 = vmul.f32 %v1528, 1.442695
        %v1710 = vpow.pop %v1709
        %v1711 = vmul.f32 %v1529, 1.442695
        %v1712 = vpow.pop %v1711
        %v1713 = vmul.f32 %v1530, 1.442695
        %v1714 = vpow.pop %v1713
        %v1715 = vmul.f32 %v1531, 1.442695
        %v1716 = vpow.pop %v1715
        %v1717 = vmul.f32 %v1532, 1.442695
        %v1718 = vpow.pop %v1717
        %v1719 = vmul.f32 %v1533, 1.442695
        %v1720 = vpow.pop %v1719
        %v1721 = vmul.f32 %v1534, 1.442695
        %v1722 = vpow.pop %v1721
        %v1723 = vmul.f32 %v1535, 1.442695
        %v1724 = vpow.pop %v1723
        %v1725 = vmul.f32 %v1536, 1.442695
        %v1726 = vpow.pop %v1725
        %v1727 = vmul.f32 %v1537, 1.442695
        %v1728 = vpow.pop %v1727
        %v1729 = vmul.f32 %v1538, 1.442695
        %v1730 = vpow.pop %v1729
        %v1731 = vmul.f32 %v1539, 1.442695
        %v1732 = vpow.pop %v1731
        %v1733 = vmul.f32 %v1540, 1.442695
        %v1734 = vpow.pop %v1733
        %v1735 = vmul.f32 %v1541, 1.442695
        %v1736 = vpow.pop %v1735
        %v1737 = vmul.f32 %v1542, 1.442695
        %v1738 = vpow.pop %v1737
        %v1739 = vmul.f32 %v1543, 1.442695
        %v1740 = vpow.pop %v1739
        %v1741 = vmul.f32 %v1544, 1.442695
        %v1742 = vpow.pop %v1741
        %v1743 = vmul.f32 %v1545, 1.442695
        %v1744 = vpow.pop %v1743
        %v1745 = vmul.f32 %v1546, 1.442695
        %v1746 = vpow.pop %v1745
        %v1747 = vmul.f32 %v1547, 1.442695
        %v1748 = vpow.pop %v1747
        %v1749 = vmul.f32 %v1548, 1.442695
        %v1750 = vpow.pop %v1749
        %v1751 = vmul.f32 %v1549, 1.442695
        %v1752 = vpow.pop %v1751
        %v1753 = vmul.f32 %v1550, 1.442695
        %v1754 = vpow.pop %v1753
        %v1755 = vmul.f32 %v1551, 1.442695
        %v1756 = vpow.pop %v1755
        %v1757 = vmul.f32 %v1552, 1.442695
        %v1758 = vpow.pop %v1757
        %v1759 = vmul.f32 %v1553, 1.442695
        %v1760 = vpow.pop %v1759
        %v1761 = vmul.f32 %v1554, 1.442695
        %v1762 = vpow.pop %v1761
        %v1763 = vmul.f32 %v1555, 1.442695
        %v1764 = vpow.pop %v1763
        %v1765 = vmul.f32 %v1556, 1.442695
        %v1766 = vpow.pop %v1765
        %v1767 = vmul.f32 %v1557, 1.442695
        %v1768 = vpow.pop %v1767
        %v1769 = vmul.f32 %v1558, 1.442695
        %v1770 = vpow.pop %v1769
        %v1771 = vmul.f32 %v1559, 1.442695
        %v1772 = vpow.pop %v1771
        %v1773 = vmul.f32 %v1560, 1.442695
        %v1774 = vpow.pop %v1773
        %v1775 = vmul.f32 %v1561, 1.442695
        %v1776 = vpow.pop %v1775
        %v1777 = vmul.f32 %v1562, 1.442695
        %v1778 = vpow.pop %v1777
        %v1779 = vmul.f32 %v1563, 1.442695
        %v1780 = vpow.pop %v1779
        %v1781 = vmul.f32 %v1564, 1.442695
        %v1782 = vpow.pop %v1781
        %v1783 = vmul.f32 %v1565, 1.442695
        %v1784 = vpow.pop %v1783
        %v1785 = vmul.f32 %v1566, 1.442695
        %v1786 = vpow.pop %v1785
        %v1787 = vmul.f32 %v1567, 1.442695
        %v1788 = vpow.pop %v1787
        %v1789 = vmul.f32 %v1568, 1.442695
        %v1790 = vpow.pop %v1789
        %v1791 = vmul.f32 %v1569, 1.442695
        %v1792 = vpow.pop %v1791
        %v1793 = vmul.f32 %v1570, 1.442695
        %v1794 = vpow.pop %v1793
        %v1795 = vmul.f32 %v1571, 1.442695
        %v1796 = vpow.pop %v1795
        %v1797 = vmul.f32 %v1572, 1.442695
        %v1798 = vpow.pop %v1797
        %v1799 = vmul.f32 %v1573, 1.442695
        %v1800 = vpow.pop %v1799
        %v1801 = vmul.f32 %v1574, 1.442695
        %v1802 = vpow.pop %v1801
        %v1803 = vmul.f32 %v1575, 1.442695
        %v1804 = vpow.pop %v1803
        %v1805 = vmul.f32 %v1576, 1.442695
        %v1806 = vpow.pop %v1805
        %v1807 = vmul.f32 %v1577, 1.442695
        %v1808 = vpow.pop %v1807
        %v1809 = vmul.f32 %v1578, 1.442695
        %v1810 = vpow.pop %v1809
        %v1811 = vmul.f32 %v1579, 1.442695
        %v1812 = vpow.pop %v1811
        %v1813 = vmul.f32 %v1580, 1.442695
        %v1814 = vpow.pop %v1813
        %v1815 = vmul.f32 %v1581, 1.442695
        %v1816 = vpow.pop %v1815
        %v1817 = vmul.f32 %v1582, 1.442695
        %v1818 = vpow.pop %v1817
        %v1819 = vmul.f32 %v1583, 1.442695
        %v1820 = vpow.pop %v1819
        %v1821 = vmul.f32 %v1584, 1.442695
        %v1822 = vpow.pop %v1821
        %v1823 = vmul.f32 %v1585, 1.442695
        %v1824 = vpow.pop %v1823
        %v1825 = vmul.f32 %v1586, 1.442695
        %v1826 = vpow.pop %v1825
        %v1827 = vmul.f32 %v1587, 1.442695
        %v1828 = vpow.pop %v1827
        %v1829 = vmul.f32 %v1588, 1.442695
        %v1830 = vpow.pop %v1829
        %v1831 = vmul.f32 %v1589, 1.442695
        %v1832 = vpow.pop %v1831
        %v1833 = vmul.f32 %v1590, 1.442695
        %v1834 = vpow.pop %v1833
        %v1835 = vmul.f32 %v1591, 1.442695
        %v1836 = vpow.pop %v1835
        %v1837 = vmul.f32 %v1592, 1.442695
        %v1838 = vpow.pop %v1837
        %v1839 = vmul.f32 %v1593, 1.442695
        %v1840 = vpow.pop %v1839
        %v1841 = vmul.f32 %v1594, 1.442695
        %v1842 = vpow.pop %v1841
        %v1843 = vmul.f32 %v1595, 1.442695
        %v1844 = vpow.pop %v1843
        %v1845 = vmul.f32 %v1596, 1.442695
        %v1846 = vpow.pop %v1845
        %v1847 = vmul.f32 %v1597, 1.442695
        %v1848 = vpow.pop %v1847
        %v1849 = vmul.f32 %v1598, 1.442695
        %v1850 = vpow.pop %v1849
        %v1851 = vmul.f32 %v1599, 1.442695
        %v1852 = vpow.pop %v1851
        %v1853 = vmul.f32 %v1600, 1.442695
        %v1854 = vpow.pop %v1853
        %v1855 = vmul.f32 %v1601, 1.442695
        %v1856 = vpow.pop %v1855
        %v1857 = vmul.f32 %v1602, 1.442695
        %v1858 = vpow.pop %v1857
        %v1859 = vsub.f32 %v1604, 1.0
        %v1860 = vsub.f32 %v1606, 1.0
        %v1861 = vsub.f32 %v1608, 1.0
        %v1862 = vsub.f32 %v1610, 1.0
        %v1863 = vsub.f32 %v1612, 1.0
        %v1864 = vsub.f32 %v1614, 1.0
        %v1865 = vsub.f32 %v1616, 1.0
        %v1866 = vsub.f32 %v1618, 1.0
        %v1867 = vsub.f32 %v1620, 1.0
        %v1868 = vsub.f32 %v1622, 1.0
        %v1869 = vsub.f32 %v1624, 1.0
        %v1870 = vsub.f32 %v1626, 1.0
        %v1871 = vsub.f32 %v1628, 1.0
        %v1872 = vsub.f32 %v1630, 1.0
        %v1873 = vsub.f32 %v1632, 1.0
        %v1874 = vsub.f32 %v1634, 1.0
        %v1875 = vsub.f32 %v1636, 1.0
        %v1876 = vsub.f32 %v1638, 1.0
        %v1877 = vsub.f32 %v1640, 1.0
        %v1878 = vsub.f32 %v1642, 1.0
        %v1879 = vsub.f32 %v1644, 1.0
        %v1880 = vsub.f32 %v1646, 1.0
        %v1881 = vsub.f32 %v1648, 1.0
        %v1882 = vsub.f32 %v1650, 1.0
        %v1883 = vsub.f32 %v1652, 1.0
        %v1884 = vsub.f32 %v1654, 1.0
        %v1885 = vsub.f32 %v1656, 1.0
        %v1886 = vsub.f32 %v1658, 1.0
        %v1887 = vsub.f32 %v1660, 1.0
        %v1888 = vsub.f32 %v1662, 1.0
        %v1889 = vsub.f32 %v1664, 1.0
        %v1890 = vsub.f32 %v1666, 1.0
        %v1891 = vsub.f32 %v1668, 1.0
        %v1892 = vsub.f32 %v1670, 1.0
        %v1893 = vsub.f32 %v1672, 1.0
        %v1894 = vsub.f32 %v1674, 1.0
        %v1895 = vsub.f32 %v1676, 1.0
        %v1896 = vsub.f32 %v1678, 1.0
        %v1897 = vsub.f32 %v1680, 1.0
        %v1898 = vsub.f32 %v1682, 1.0
        %v1899 = vsub.f32 %v1684, 1.0
        %v1900 = vsub.f32 %v1686, 1.0
        %v1901 = vsub.f32 %v1688, 1.0
        %v1902 = vsub.f32 %v1690, 1.0
        %v1903 = vsub.f32 %v1692, 1.0
        %v1904 = vsub.f32 %v1694, 1.0
        %v1905 = vsub.f32 %v1696, 1.0
        %v1906 = vsub.f32 %v1698, 1.0
        %v1907 = vsub.f32 %v1700, 1.0
        %v1908 = vsub.f32 %v1702, 1.0
        %v1909 = vsub.f32 %v1704, 1.0
        %v1910 = vsub.f32 %v1706, 1.0
        %v1911 = vsub.f32 %v1708, 1.0
        %v1912 = vsub.f32 %v1710, 1.0
        %v1913 = vsub.f32 %v1712, 1.0
        %v1914 = vsub.f32 %v1714, 1.0
        %v1915 = vsub.f32 %v1716, 1.0
        %v1916 = vsub.f32 %v1718, 1.0
        %v1917 = vsub.f32 %v1720, 1.0
        %v1918 = vsub.f32 %v1722, 1.0
        %v1919 = vsub.f32 %v1724, 1.0
        %v1920 = vsub.f32 %v1726, 1.0
        %v1921 = vsub.f32 %v1728, 1.0
        %v1922 = vsub.f32 %v1730, 1.0
        %v1923 = vsub.f32 %v1732, 1.0
        %v1924 = vsub.f32 %v1734, 1.0
        %v1925 = vsub.f32 %v1736, 1.0
        %v1926 = vsub.f32 %v1738, 1.0
        %v1927 = vsub.f32 %v1740, 1.0
        %v1928 = vsub.f32 %v1742, 1.0
        %v1929 = vsub.f32 %v1744, 1.0
        %v1930 = vsub.f32 %v1746, 1.0
        %v1931 = vsub.f32 %v1748, 1.0
        %v1932 = vsub.f32 %v1750, 1.0
        %v1933 = vsub.f32 %v1752, 1.0
        %v1934 = vsub.f32 %v1754, 1.0
        %v1935 = vsub.f32 %v1756, 1.0
        %v1936 = vsub.f32 %v1758, 1.0
        %v1937 = vsub.f32 %v1760, 1.0
        %v1938 = vsub.f32 %v1762, 1.0
        %v1939 = vsub.f32 %v1764, 1.0
        %v1940 = vsub.f32 %v1766, 1.0
        %v1941 = vsub.f32 %v1768, 1.0
        %v1942 = vsub.f32 %v1770, 1.0
        %v1943 = vsub.f32 %v1772, 1.0
        %v1944 = vsub.f32 %v1774, 1.0
        %v1945 = vsub.f32 %v1776, 1.0
        %v1946 = vsub.f32 %v1778, 1.0
        %v1947 = vsub.f32 %v1780, 1.0
        %v1948 = vsub.f32 %v1782, 1.0
        %v1949 = vsub.f32 %v1784, 1.0
        %v1950 = vsub.f32 %v1786, 1.0
        %v1951 = vsub.f32 %v1788, 1.0
        %v1952 = vsub.f32 %v1790, 1.0
        %v1953 = vsub.f32 %v1792, 1.0
        %v1954 = vsub.f32 %v1794, 1.0
        %v1955 = vsub.f32 %v1796, 1.0
        %v1956 = vsub.f32 %v1798, 1.0
        %v1957 = vsub.f32 %v1800, 1.0
        %v1958 = vsub.f32 %v1802, 1.0
        %v1959 = vsub.f32 %v1804, 1.0
        %v1960 = vsub.f32 %v1806, 1.0
        %v1961 = vsub.f32 %v1808, 1.0
        %v1962 = vsub.f32 %v1810, 1.0
        %v1963 = vsub.f32 %v1812, 1.0
        %v1964 = vsub.f32 %v1814, 1.0
        %v1965 = vsub.f32 %v1816, 1.0
        %v1966 = vsub.f32 %v1818, 1.0
        %v1967 = vsub.f32 %v1820, 1.0
        %v1968 = vsub.f32 %v1822, 1.0
        %v1969 = vsub.f32 %v1824, 1.0
        %v1970 = vsub.f32 %v1826, 1.0
        %v1971 = vsub.f32 %v1828, 1.0
        %v1972 = vsub.f32 %v1830, 1.0
        %v1973 = vsub.f32 %v1832, 1.0
        %v1974 = vsub.f32 %v1834, 1.0
        %v1975 = vsub.f32 %v1836, 1.0
        %v1976 = vsub.f32 %v1838, 1.0
        %v1977 = vsub.f32 %v1840, 1.0
        %v1978 = vsub.f32 %v1842, 1.0
        %v1979 = vsub.f32 %v1844, 1.0
        %v1980 = vsub.f32 %v1846, 1.0
        %v1981 = vsub.f32 %v1848, 1.0
        %v1982 = vsub.f32 %v1850, 1.0
        %v1983 = vsub.f32 %v1852, 1.0
        %v1984 = vsub.f32 %v1854, 1.0
        %v1985 = vsub.f32 %v1856, 1.0
        %v1986 = vsub.f32 %v1858, 1.0
        %v1987 = vsel %vm1347, %v837, %v1859
        %v1988 = vsel %vm1348, %v840, %v1860
        %v1989 = vsel %vm1349, %v845, %v1861
        %v1990 = vsel %vm1350, %v848, %v1862
        %v1991 = vsel %vm1351, %v853, %v1863
        %v1992 = vsel %vm1352, %v856, %v1864
        %v1993 = vsel %vm1353, %v861, %v1865
        %v1994 = vsel %vm1354, %v864, %v1866
        %v1995 = vsel %vm1355, %v869, %v1867
        %v1996 = vsel %vm1356, %v872, %v1868
        %v1997 = vsel %vm1357, %v877, %v1869
        %v1998 = vsel %vm1358, %v880, %v1870
        %v1999 = vsel %vm1359, %v885, %v1871
        %v2000 = vsel %vm1360, %v888, %v1872
        %v2001 = vsel %vm1361, %v893, %v1873
        %v2002 = vsel %vm1362, %v896, %v1874
        %v2003 = vsel %vm1363, %v901, %v1875
        %v2004 = vsel %vm1364, %v904, %v1876
        %v2005 = vsel %vm1365, %v909, %v1877
        %v2006 = vsel %vm1366, %v912, %v1878
        %v2007 = vsel %vm1367, %v917, %v1879
        %v2008 = vsel %vm1368, %v920, %v1880
        %v2009 = vsel %vm1369, %v925, %v1881
        %v2010 = vsel %vm1370, %v928, %v1882
        %v2011 = vsel %vm1371, %v933, %v1883
        %v2012 = vsel %vm1372, %v936, %v1884
        %v2013 = vsel %vm1373, %v941, %v1885
        %v2014 = vsel %vm1374, %v944, %v1886
        %v2015 = vsel %vm1375, %v949, %v1887
        %v2016 = vsel %vm1376, %v952, %v1888
        %v2017 = vsel %vm1377, %v957, %v1889
        %v2018 = vsel %vm1378, %v960, %v1890
        %v2019 = vsel %vm1379, %v965, %v1891
        %v2020 = vsel %vm1380, %v968, %v1892
        %v2021 = vsel %vm1381, %v973, %v1893
        %v2022 = vsel %vm1382, %v976, %v1894
        %v2023 = vsel %vm1383, %v981, %v1895
        %v2024 = vsel %vm1384, %v984, %v1896
        %v2025 = vsel %vm1385, %v989, %v1897
        %v2026 = vsel %vm1386, %v992, %v1898
        %v2027 = vsel %vm1387, %v997, %v1899
        %v2028 = vsel %vm1388, %v1000, %v1900
        %v2029 = vsel %vm1389, %v1005, %v1901
        %v2030 = vsel %vm1390, %v1008, %v1902
        %v2031 = vsel %vm1391, %v1013, %v1903
        %v2032 = vsel %vm1392, %v1016, %v1904
        %v2033 = vsel %vm1393, %v1021, %v1905
        %v2034 = vsel %vm1394, %v1024, %v1906
        %v2035 = vsel %vm1395, %v1029, %v1907
        %v2036 = vsel %vm1396, %v1032, %v1908
        %v2037 = vsel %vm1397, %v1037, %v1909
        %v2038 = vsel %vm1398, %v1040, %v1910
        %v2039 = vsel %vm1399, %v1045, %v1911
        %v2040 = vsel %vm1400, %v1048, %v1912
        %v2041 = vsel %vm1401, %v1053, %v1913
        %v2042 = vsel %vm1402, %v1056, %v1914
        %v2043 = vsel %vm1403, %v1061, %v1915
        %v2044 = vsel %vm1404, %v1064, %v1916
        %v2045 = vsel %vm1405, %v1069, %v1917
        %v2046 = vsel %vm1406, %v1072, %v1918
        %v2047 = vsel %vm1407, %v1077, %v1919
        %v2048 = vsel %vm1408, %v1080, %v1920
        %v2049 = vsel %vm1409, %v1085, %v1921
        %v2050 = vsel %vm1410, %v1088, %v1922
        %v2051 = vsel %vm1411, %v1093, %v1923
        %v2052 = vsel %vm1412, %v1096, %v1924
        %v2053 = vsel %vm1413, %v1101, %v1925
        %v2054 = vsel %vm1414, %v1104, %v1926
        %v2055 = vsel %vm1415, %v1109, %v1927
        %v2056 = vsel %vm1416, %v1112, %v1928
        %v2057 = vsel %vm1417, %v1117, %v1929
        %v2058 = vsel %vm1418, %v1120, %v1930
        %v2059 = vsel %vm1419, %v1125, %v1931
        %v2060 = vsel %vm1420, %v1128, %v1932
        %v2061 = vsel %vm1421, %v1133, %v1933
        %v2062 = vsel %vm1422, %v1136, %v1934
        %v2063 = vsel %vm1423, %v1141, %v1935
        %v2064 = vsel %vm1424, %v1144, %v1936
        %v2065 = vsel %vm1425, %v1149, %v1937
        %v2066 = vsel %vm1426, %v1152, %v1938
        %v2067 = vsel %vm1427, %v1157, %v1939
        %v2068 = vsel %vm1428, %v1160, %v1940
        %v2069 = vsel %vm1429, %v1165, %v1941
        %v2070 = vsel %vm1430, %v1168, %v1942
        %v2071 = vsel %vm1431, %v1173, %v1943
        %v2072 = vsel %vm1432, %v1176, %v1944
        %v2073 = vsel %vm1433, %v1181, %v1945
        %v2074 = vsel %vm1434, %v1184, %v1946
        %v2075 = vsel %vm1435, %v1189, %v1947
        %v2076 = vsel %vm1436, %v1192, %v1948
        %v2077 = vsel %vm1437, %v1197, %v1949
        %v2078 = vsel %vm1438, %v1200, %v1950
        %v2079 = vsel %vm1439, %v1205, %v1951
        %v2080 = vsel %vm1440, %v1208, %v1952
        %v2081 = vsel %vm1441, %v1213, %v1953
        %v2082 = vsel %vm1442, %v1216, %v1954
        %v2083 = vsel %vm1443, %v1221, %v1955
        %v2084 = vsel %vm1444, %v1224, %v1956
        %v2085 = vsel %vm1445, %v1229, %v1957
        %v2086 = vsel %vm1446, %v1232, %v1958
        %v2087 = vsel %vm1447, %v1237, %v1959
        %v2088 = vsel %vm1448, %v1240, %v1960
        %v2089 = vsel %vm1449, %v1245, %v1961
        %v2090 = vsel %vm1450, %v1248, %v1962
        %v2091 = vsel %vm1451, %v1253, %v1963
        %v2092 = vsel %vm1452, %v1256, %v1964
        %v2093 = vsel %vm1453, %v1261, %v1965
        %v2094 = vsel %vm1454, %v1264, %v1966
        %v2095 = vsel %vm1455, %v1269, %v1967
        %v2096 = vsel %vm1456, %v1272, %v1968
        %v2097 = vsel %vm1457, %v1277, %v1969
        %v2098 = vsel %vm1458, %v1280, %v1970
        %v2099 = vsel %vm1459, %v1285, %v1971
        %v2100 = vsel %vm1460, %v1288, %v1972
        %v2101 = vsel %vm1461, %v1293, %v1973
        %v2102 = vsel %vm1462, %v1296, %v1974
        %v2103 = vsel %vm1463, %v1301, %v1975
        %v2104 = vsel %vm1464, %v1304, %v1976
        %v2105 = vsel %vm1465, %v1309, %v1977
        %v2106 = vsel %vm1466, %v1312, %v1978
        %v2107 = vsel %vm1467, %v1317, %v1979
        %v2108 = vsel %vm1468, %v1320, %v1980
        %v2109 = vsel %vm1469, %v1325, %v1981
        %v2110 = vsel %vm1470, %v1328, %v1982
        %v2111 = vsel %vm1471, %v1333, %v1983
        %v2112 = vsel %vm1472, %v1336, %v1984
        %v2113 = vsel %vm1473, %v1341, %v1985
        %v2114 = vsel %vm1474, %v1344, %v1986
        %v2115 = vpack.c.bf16 %v1988, %v1987
        %v2116 = vpack.c.bf16 %v1990, %v1989
        %v2117 = vpack.c.bf16 %v1992, %v1991
        %v2118 = vpack.c.bf16 %v1994, %v1993
        %v2119 = vpack.c.bf16 %v1996, %v1995
        %v2120 = vpack.c.bf16 %v1998, %v1997
        %v2121 = vpack.c.bf16 %v2000, %v1999
        %v2122 = vpack.c.bf16 %v2002, %v2001
        %v2123 = vpack.c.bf16 %v2004, %v2003
        %v2124 = vpack.c.bf16 %v2006, %v2005
        %v2125 = vpack.c.bf16 %v2008, %v2007
        %v2126 = vpack.c.bf16 %v2010, %v2009
        %v2127 = vpack.c.bf16 %v2012, %v2011
        %v2128 = vpack.c.bf16 %v2014, %v2013
        %v2129 = vpack.c.bf16 %v2016, %v2015
        %v2130 = vpack.c.bf16 %v2018, %v2017
        %v2131 = vpack.c.bf16 %v2020, %v2019
        %v2132 = vpack.c.bf16 %v2022, %v2021
        %v2133 = vpack.c.bf16 %v2024, %v2023
        %v2134 = vpack.c.bf16 %v2026, %v2025
        %v2135 = vpack.c.bf16 %v2028, %v2027
        %v2136 = vpack.c.bf16 %v2030, %v2029
        %v2137 = vpack.c.bf16 %v2032, %v2031
        %v2138 = vpack.c.bf16 %v2034, %v2033
        %v2139 = vpack.c.bf16 %v2036, %v2035
        %v2140 = vpack.c.bf16 %v2038, %v2037
        %v2141 = vpack.c.bf16 %v2040, %v2039
        %v2142 = vpack.c.bf16 %v2042, %v2041
        %v2143 = vpack.c.bf16 %v2044, %v2043
        %v2144 = vpack.c.bf16 %v2046, %v2045
        %v2145 = vpack.c.bf16 %v2048, %v2047
        %v2146 = vpack.c.bf16 %v2050, %v2049
        %v2147 = vpack.c.bf16 %v2052, %v2051
        %v2148 = vpack.c.bf16 %v2054, %v2053
        %v2149 = vpack.c.bf16 %v2056, %v2055
        %v2150 = vpack.c.bf16 %v2058, %v2057
        %v2151 = vpack.c.bf16 %v2060, %v2059
        %v2152 = vpack.c.bf16 %v2062, %v2061
        %v2153 = vpack.c.bf16 %v2064, %v2063
        %v2154 = vpack.c.bf16 %v2066, %v2065
        %v2155 = vpack.c.bf16 %v2068, %v2067
        %v2156 = vpack.c.bf16 %v2070, %v2069
        %v2157 = vpack.c.bf16 %v2072, %v2071
        %v2158 = vpack.c.bf16 %v2074, %v2073
        %v2159 = vpack.c.bf16 %v2076, %v2075
        %v2160 = vpack.c.bf16 %v2078, %v2077
        %v2161 = vpack.c.bf16 %v2080, %v2079
        %v2162 = vpack.c.bf16 %v2082, %v2081
        %v2163 = vpack.c.bf16 %v2084, %v2083
        %v2164 = vpack.c.bf16 %v2086, %v2085
        %v2165 = vpack.c.bf16 %v2088, %v2087
        %v2166 = vpack.c.bf16 %v2090, %v2089
        %v2167 = vpack.c.bf16 %v2092, %v2091
        %v2168 = vpack.c.bf16 %v2094, %v2093
        %v2169 = vpack.c.bf16 %v2096, %v2095
        %v2170 = vpack.c.bf16 %v2098, %v2097
        %v2171 = vpack.c.bf16 %v2100, %v2099
        %v2172 = vpack.c.bf16 %v2102, %v2101
        %v2173 = vpack.c.bf16 %v2104, %v2103
        %v2174 = vpack.c.bf16 %v2106, %v2105
        %v2175 = vpack.c.bf16 %v2108, %v2107
        %v2176 = vpack.c.bf16 %v2110, %v2109
        %v2177 = vpack.c.bf16 %v2112, %v2111
        %v2178 = vpack.c.bf16 %v2114, %v2113
        %v2243 = vunpack.c.l.b16 %v2115
        %v2244 = vunpack.c.h.b16 %v2115
        %v2245 = vunpack.c.l.b16 %v2116
        %v2246 = vunpack.c.h.b16 %v2116
        %v2247 = vunpack.c.l.b16 %v2117
        %v2248 = vunpack.c.h.b16 %v2117
        %v2249 = vunpack.c.l.b16 %v2118
        %v2250 = vunpack.c.h.b16 %v2118
        %v2251 = vunpack.c.l.b16 %v2119
        %v2252 = vunpack.c.h.b16 %v2119
        %v2253 = vunpack.c.l.b16 %v2120
        %v2254 = vunpack.c.h.b16 %v2120
        %v2255 = vunpack.c.l.b16 %v2121
        %v2256 = vunpack.c.h.b16 %v2121
        %v2257 = vunpack.c.l.b16 %v2122
        %v2258 = vunpack.c.h.b16 %v2122
        %v2259 = vunpack.c.l.b16 %v2123
        %v2260 = vunpack.c.h.b16 %v2123
        %v2261 = vunpack.c.l.b16 %v2124
        %v2262 = vunpack.c.h.b16 %v2124
        %v2263 = vunpack.c.l.b16 %v2125
        %v2264 = vunpack.c.h.b16 %v2125
        %v2265 = vunpack.c.l.b16 %v2126
        %v2266 = vunpack.c.h.b16 %v2126
        %v2267 = vunpack.c.l.b16 %v2127
        %v2268 = vunpack.c.h.b16 %v2127
        %v2269 = vunpack.c.l.b16 %v2128
        %v2270 = vunpack.c.h.b16 %v2128
        %v2271 = vunpack.c.l.b16 %v2129
        %v2272 = vunpack.c.h.b16 %v2129
        %v2273 = vunpack.c.l.b16 %v2130
        %v2274 = vunpack.c.h.b16 %v2130
        %v2275 = vunpack.c.l.b16 %v2131
        %v2276 = vunpack.c.h.b16 %v2131
        %v2277 = vunpack.c.l.b16 %v2132
        %v2278 = vunpack.c.h.b16 %v2132
        %v2279 = vunpack.c.l.b16 %v2133
        %v2280 = vunpack.c.h.b16 %v2133
        %v2281 = vunpack.c.l.b16 %v2134
        %v2282 = vunpack.c.h.b16 %v2134
        %v2283 = vunpack.c.l.b16 %v2135
        %v2284 = vunpack.c.h.b16 %v2135
        %v2285 = vunpack.c.l.b16 %v2136
        %v2286 = vunpack.c.h.b16 %v2136
        %v2287 = vunpack.c.l.b16 %v2137
        %v2288 = vunpack.c.h.b16 %v2137
        %v2289 = vunpack.c.l.b16 %v2138
        %v2290 = vunpack.c.h.b16 %v2138
        %v2291 = vunpack.c.l.b16 %v2139
        %v2292 = vunpack.c.h.b16 %v2139
        %v2293 = vunpack.c.l.b16 %v2140
        %v2294 = vunpack.c.h.b16 %v2140
        %v2295 = vunpack.c.l.b16 %v2141
        %v2296 = vunpack.c.h.b16 %v2141
        %v2297 = vunpack.c.l.b16 %v2142
        %v2298 = vunpack.c.h.b16 %v2142
        %v2299 = vunpack.c.l.b16 %v2143
        %v2300 = vunpack.c.h.b16 %v2143
        %v2301 = vunpack.c.l.b16 %v2144
        %v2302 = vunpack.c.h.b16 %v2144
        %v2303 = vunpack.c.l.b16 %v2145
        %v2304 = vunpack.c.h.b16 %v2145
        %v2305 = vunpack.c.l.b16 %v2146
        %v2306 = vunpack.c.h.b16 %v2146
        %v2307 = vunpack.c.l.b16 %v2147
        %v2308 = vunpack.c.h.b16 %v2147
        %v2309 = vunpack.c.l.b16 %v2148
        %v2310 = vunpack.c.h.b16 %v2148
        %v2311 = vunpack.c.l.b16 %v2149
        %v2312 = vunpack.c.h.b16 %v2149
        %v2313 = vunpack.c.l.b16 %v2150
        %v2314 = vunpack.c.h.b16 %v2150
        %v2315 = vunpack.c.l.b16 %v2151
        %v2316 = vunpack.c.h.b16 %v2151
        %v2317 = vunpack.c.l.b16 %v2152
        %v2318 = vunpack.c.h.b16 %v2152
        %v2319 = vunpack.c.l.b16 %v2153
        %v2320 = vunpack.c.h.b16 %v2153
        %v2321 = vunpack.c.l.b16 %v2154
        %v2322 = vunpack.c.h.b16 %v2154
        %v2323 = vunpack.c.l.b16 %v2155
        %v2324 = vunpack.c.h.b16 %v2155
        %v2325 = vunpack.c.l.b16 %v2156
        %v2326 = vunpack.c.h.b16 %v2156
        %v2327 = vunpack.c.l.b16 %v2157
        %v2328 = vunpack.c.h.b16 %v2157
        %v2329 = vunpack.c.l.b16 %v2158
        %v2330 = vunpack.c.h.b16 %v2158
        %v2331 = vunpack.c.l.b16 %v2159
        %v2332 = vunpack.c.h.b16 %v2159
        %v2333 = vunpack.c.l.b16 %v2160
        %v2334 = vunpack.c.h.b16 %v2160
        %v2335 = vunpack.c.l.b16 %v2161
        %v2336 = vunpack.c.h.b16 %v2161
        %v2337 = vunpack.c.l.b16 %v2162
        %v2338 = vunpack.c.h.b16 %v2162
        %v2339 = vunpack.c.l.b16 %v2163
        %v2340 = vunpack.c.h.b16 %v2163
        %v2341 = vunpack.c.l.b16 %v2164
        %v2342 = vunpack.c.h.b16 %v2164
        %v2343 = vunpack.c.l.b16 %v2165
        %v2344 = vunpack.c.h.b16 %v2165
        %v2345 = vunpack.c.l.b16 %v2166
        %v2346 = vunpack.c.h.b16 %v2166
        %v2347 = vunpack.c.l.b16 %v2167
        %v2348 = vunpack.c.h.b16 %v2167
        %v2349 = vunpack.c.l.b16 %v2168
        %v2350 = vunpack.c.h.b16 %v2168
        %v2351 = vunpack.c.l.b16 %v2169
        %v2352 = vunpack.c.h.b16 %v2169
        %v2353 = vunpack.c.l.b16 %v2170
        %v2354 = vunpack.c.h.b16 %v2170
        %v2355 = vunpack.c.l.b16 %v2171
        %v2356 = vunpack.c.h.b16 %v2171
        %v2357 = vunpack.c.l.b16 %v2172
        %v2358 = vunpack.c.h.b16 %v2172
        %v2359 = vunpack.c.l.b16 %v2173
        %v2360 = vunpack.c.h.b16 %v2173
        %v2361 = vunpack.c.l.b16 %v2174
        %v2362 = vunpack.c.h.b16 %v2174
        %v2363 = vunpack.c.l.b16 %v2175
        %v2364 = vunpack.c.h.b16 %v2175
        %v2365 = vunpack.c.l.b16 %v2176
        %v2366 = vunpack.c.h.b16 %v2176
        %v2367 = vunpack.c.l.b16 %v2177
        %v2368 = vunpack.c.h.b16 %v2177
        %v2369 = vunpack.c.l.b16 %v2178
        %v2370 = vunpack.c.h.b16 %v2178
        %v2371 = vpack.c.b16 %v2243, %v2243
        %v2372 = vpack.c.b16 %v2244, %v2244
        %v2373 = vpack.c.b16 %v2245, %v2245
        %v2374 = vpack.c.b16 %v2246, %v2246
        %v2375 = vpack.c.b16 %v2247, %v2247
        %v2376 = vpack.c.b16 %v2248, %v2248
        %v2377 = vpack.c.b16 %v2249, %v2249
        %v2378 = vpack.c.b16 %v2250, %v2250
        %v2379 = vpack.c.b16 %v2251, %v2251
        %v2380 = vpack.c.b16 %v2252, %v2252
        %v2381 = vpack.c.b16 %v2253, %v2253
        %v2382 = vpack.c.b16 %v2254, %v2254
        %v2383 = vpack.c.b16 %v2255, %v2255
        %v2384 = vpack.c.b16 %v2256, %v2256
        %v2385 = vpack.c.b16 %v2257, %v2257
        %v2386 = vpack.c.b16 %v2258, %v2258
        %v2387 = vpack.c.b16 %v2259, %v2259
        %v2388 = vpack.c.b16 %v2260, %v2260
        %v2389 = vpack.c.b16 %v2261, %v2261
        %v2390 = vpack.c.b16 %v2262, %v2262
        %v2391 = vpack.c.b16 %v2263, %v2263
        %v2392 = vpack.c.b16 %v2264, %v2264
        %v2393 = vpack.c.b16 %v2265, %v2265
        %v2394 = vpack.c.b16 %v2266, %v2266
        %v2395 = vpack.c.b16 %v2267, %v2267
        %v2396 = vpack.c.b16 %v2268, %v2268
        %v2397 = vpack.c.b16 %v2269, %v2269
        %v2398 = vpack.c.b16 %v2270, %v2270
        %v2399 = vpack.c.b16 %v2271, %v2271
        %v2400 = vpack.c.b16 %v2272, %v2272
        %v2401 = vpack.c.b16 %v2273, %v2273
        %v2402 = vpack.c.b16 %v2274, %v2274
        %v2403 = vpack.c.b16 %v2275, %v2275
        %v2404 = vpack.c.b16 %v2276, %v2276
        %v2405 = vpack.c.b16 %v2277, %v2277
        %v2406 = vpack.c.b16 %v2278, %v2278
        %v2407 = vpack.c.b16 %v2279, %v2279
        %v2408 = vpack.c.b16 %v2280, %v2280
        %v2409 = vpack.c.b16 %v2281, %v2281
        %v2410 = vpack.c.b16 %v2282, %v2282
        %v2411 = vpack.c.b16 %v2283, %v2283
        %v2412 = vpack.c.b16 %v2284, %v2284
        %v2413 = vpack.c.b16 %v2285, %v2285
        %v2414 = vpack.c.b16 %v2286, %v2286
        %v2415 = vpack.c.b16 %v2287, %v2287
        %v2416 = vpack.c.b16 %v2288, %v2288
        %v2417 = vpack.c.b16 %v2289, %v2289
        %v2418 = vpack.c.b16 %v2290, %v2290
        %v2419 = vpack.c.b16 %v2291, %v2291
        %v2420 = vpack.c.b16 %v2292, %v2292
        %v2421 = vpack.c.b16 %v2293, %v2293
        %v2422 = vpack.c.b16 %v2294, %v2294
        %v2423 = vpack.c.b16 %v2295, %v2295
        %v2424 = vpack.c.b16 %v2296, %v2296
        %v2425 = vpack.c.b16 %v2297, %v2297
        %v2426 = vpack.c.b16 %v2298, %v2298
        %v2427 = vpack.c.b16 %v2299, %v2299
        %v2428 = vpack.c.b16 %v2300, %v2300
        %v2429 = vpack.c.b16 %v2301, %v2301
        %v2430 = vpack.c.b16 %v2302, %v2302
        %v2431 = vpack.c.b16 %v2303, %v2303
        %v2432 = vpack.c.b16 %v2304, %v2304
        %v2433 = vpack.c.b16 %v2305, %v2305
        %v2434 = vpack.c.b16 %v2306, %v2306
        %v2435 = vpack.c.b16 %v2307, %v2307
        %v2436 = vpack.c.b16 %v2308, %v2308
        %v2437 = vpack.c.b16 %v2309, %v2309
        %v2438 = vpack.c.b16 %v2310, %v2310
        %v2439 = vpack.c.b16 %v2311, %v2311
        %v2440 = vpack.c.b16 %v2312, %v2312
        %v2441 = vpack.c.b16 %v2313, %v2313
        %v2442 = vpack.c.b16 %v2314, %v2314
        %v2443 = vpack.c.b16 %v2315, %v2315
        %v2444 = vpack.c.b16 %v2316, %v2316
        %v2445 = vpack.c.b16 %v2317, %v2317
        %v2446 = vpack.c.b16 %v2318, %v2318
        %v2447 = vpack.c.b16 %v2319, %v2319
        %v2448 = vpack.c.b16 %v2320, %v2320
        %v2449 = vpack.c.b16 %v2321, %v2321
        %v2450 = vpack.c.b16 %v2322, %v2322
        %v2451 = vpack.c.b16 %v2323, %v2323
        %v2452 = vpack.c.b16 %v2324, %v2324
        %v2453 = vpack.c.b16 %v2325, %v2325
        %v2454 = vpack.c.b16 %v2326, %v2326
        %v2455 = vpack.c.b16 %v2327, %v2327
        %v2456 = vpack.c.b16 %v2328, %v2328
        %v2457 = vpack.c.b16 %v2329, %v2329
        %v2458 = vpack.c.b16 %v2330, %v2330
        %v2459 = vpack.c.b16 %v2331, %v2331
        %v2460 = vpack.c.b16 %v2332, %v2332
        %v2461 = vpack.c.b16 %v2333, %v2333
        %v2462 = vpack.c.b16 %v2334, %v2334
        %v2463 = vpack.c.b16 %v2335, %v2335
        %v2464 = vpack.c.b16 %v2336, %v2336
        %v2465 = vpack.c.b16 %v2337, %v2337
        %v2466 = vpack.c.b16 %v2338, %v2338
        %v2467 = vpack.c.b16 %v2339, %v2339
        %v2468 = vpack.c.b16 %v2340, %v2340
        %v2469 = vpack.c.b16 %v2341, %v2341
        %v2470 = vpack.c.b16 %v2342, %v2342
        %v2471 = vpack.c.b16 %v2343, %v2343
        %v2472 = vpack.c.b16 %v2344, %v2344
        %v2473 = vpack.c.b16 %v2345, %v2345
        %v2474 = vpack.c.b16 %v2346, %v2346
        %v2475 = vpack.c.b16 %v2347, %v2347
        %v2476 = vpack.c.b16 %v2348, %v2348
        %v2477 = vpack.c.b16 %v2349, %v2349
        %v2478 = vpack.c.b16 %v2350, %v2350
        %v2479 = vpack.c.b16 %v2351, %v2351
        %v2480 = vpack.c.b16 %v2352, %v2352
        %v2481 = vpack.c.b16 %v2353, %v2353
        %v2482 = vpack.c.b16 %v2354, %v2354
        %v2483 = vpack.c.b16 %v2355, %v2355
        %v2484 = vpack.c.b16 %v2356, %v2356
        %v2485 = vpack.c.b16 %v2357, %v2357
        %v2486 = vpack.c.b16 %v2358, %v2358
        %v2487 = vpack.c.b16 %v2359, %v2359
        %v2488 = vpack.c.b16 %v2360, %v2360
        %v2489 = vpack.c.b16 %v2361, %v2361
        %v2490 = vpack.c.b16 %v2362, %v2362
        %v2491 = vpack.c.b16 %v2363, %v2363
        %v2492 = vpack.c.b16 %v2364, %v2364
        %v2493 = vpack.c.b16 %v2365, %v2365
        %v2494 = vpack.c.b16 %v2366, %v2366
        %v2495 = vpack.c.b16 %v2367, %v2367
        %v2496 = vpack.c.b16 %v2368, %v2368
        %v2497 = vpack.c.b16 %v2369, %v2369
        %v2498 = vpack.c.b16 %v2370, %v2370
        %2627 = vst [vmem:[%s215] sm:$0xf] %v2371
        %2628 = vst [vmem:[%s215 + $0x4] sm:$0xf] %v2372
        %2629 = vst [vmem:[%s215 + $0x8] sm:$0xf] %v2373
        %2630 = vst [vmem:[%s215 + $0xc] sm:$0xf] %v2374
        %2631 = vst [vmem:[%s215 + $0x10] sm:$0xf] %v2375
        %2632 = vst [vmem:[%s215 + $0x14] sm:$0xf] %v2376
        %2633 = vst [vmem:[%s215 + $0x18] sm:$0xf] %v2377
        %2634 = vst [vmem:[%s215 + $0x1c] sm:$0xf] %v2378
        %2635 = vst [vmem:[%s215 + $0x20] sm:$0xf] %v2379
        %2636 = vst [vmem:[%s215 + $0x24] sm:$0xf] %v2380
        %2637 = vst [vmem:[%s215 + $0x28] sm:$0xf] %v2381
        %2638 = vst [vmem:[%s215 + $0x2c] sm:$0xf] %v2382
        %2639 = vst [vmem:[%s215 + $0x30] sm:$0xf] %v2383
        %2640 = vst [vmem:[%s215 + $0x34] sm:$0xf] %v2384
        %2641 = vst [vmem:[%s215 + $0x38] sm:$0xf] %v2385
        %2642 = vst [vmem:[%s215 + $0x3c] sm:$0xf] %v2386
        %2643 = vst [vmem:[%s215 + $0x40] sm:$0xf] %v2387
        %2644 = vst [vmem:[%s215 + $0x44] sm:$0xf] %v2388
        %2645 = vst [vmem:[%s215 + $0x48] sm:$0xf] %v2389
        %2646 = vst [vmem:[%s215 + $0x4c] sm:$0xf] %v2390
        %2647 = vst [vmem:[%s215 + $0x50] sm:$0xf] %v2391
        %2648 = vst [vmem:[%s215 + $0x54] sm:$0xf] %v2392
        %2649 = vst [vmem:[%s215 + $0x58] sm:$0xf] %v2393
        %2650 = vst [vmem:[%s215 + $0x5c] sm:$0xf] %v2394
        %2651 = vst [vmem:[%s215 + $0x60] sm:$0xf] %v2395
        %2652 = vst [vmem:[%s215 + $0x64] sm:$0xf] %v2396
        %2653 = vst [vmem:[%s215 + $0x68] sm:$0xf] %v2397
        %2654 = vst [vmem:[%s215 + $0x6c] sm:$0xf] %v2398
        %2655 = vst [vmem:[%s215 + $0x70] sm:$0xf] %v2399
        %2656 = vst [vmem:[%s215 + $0x74] sm:$0xf] %v2400
        %2657 = vst [vmem:[%s215 + $0x78] sm:$0xf] %v2401
        %2658 = vst [vmem:[%s215 + $0x7c] sm:$0xf] %v2402
        %2659 = vst [vmem:[%s215 + $0x80] sm:$0xf] %v2403
        %2660 = vst [vmem:[%s215 + $0x84] sm:$0xf] %v2404
        %2661 = vst [vmem:[%s215 + $0x88] sm:$0xf] %v2405
        %2662 = vst [vmem:[%s215 + $0x8c] sm:$0xf] %v2406
        %2663 = vst [vmem:[%s215 + $0x90] sm:$0xf] %v2407
        %2664 = vst [vmem:[%s215 + $0x94] sm:$0xf] %v2408
        %2665 = vst [vmem:[%s215 + $0x98] sm:$0xf] %v2409
        %2666 = vst [vmem:[%s215 + $0x9c] sm:$0xf] %v2410
        %2667 = vst [vmem:[%s215 + $0xa0] sm:$0xf] %v2411
        %2668 = vst [vmem:[%s215 + $0xa4] sm:$0xf] %v2412
        %2669 = vst [vmem:[%s215 + $0xa8] sm:$0xf] %v2413
        %2670 = vst [vmem:[%s215 + $0xac] sm:$0xf] %v2414
        %2671 = vst [vmem:[%s215 + $0xb0] sm:$0xf] %v2415
        %2672 = vst [vmem:[%s215 + $0xb4] sm:$0xf] %v2416
        %2673 = vst [vmem:[%s215 + $0xb8] sm:$0xf] %v2417
        %2674 = vst [vmem:[%s215 + $0xbc] sm:$0xf] %v2418
        %2675 = vst [vmem:[%s215 + $0xc0] sm:$0xf] %v2419
        %2676 = vst [vmem:[%s215 + $0xc4] sm:$0xf] %v2420
        %2677 = vst [vmem:[%s215 + $0xc8] sm:$0xf] %v2421
        %2678 = vst [vmem:[%s215 + $0xcc] sm:$0xf] %v2422
        %2679 = vst [vmem:[%s215 + $0xd0] sm:$0xf] %v2423
        %2680 = vst [vmem:[%s215 + $0xd4] sm:$0xf] %v2424
        %2681 = vst [vmem:[%s215 + $0xd8] sm:$0xf] %v2425
        %2682 = vst [vmem:[%s215 + $0xdc] sm:$0xf] %v2426
        %2683 = vst [vmem:[%s215 + $0xe0] sm:$0xf] %v2427
        %2684 = vst [vmem:[%s215 + $0xe4] sm:$0xf] %v2428
        %2685 = vst [vmem:[%s215 + $0xe8] sm:$0xf] %v2429
        %2686 = vst [vmem:[%s215 + $0xec] sm:$0xf] %v2430
        %2687 = vst [vmem:[%s215 + $0xf0] sm:$0xf] %v2431
        %2688 = vst [vmem:[%s215 + $0xf4] sm:$0xf] %v2432
        %2689 = vst [vmem:[%s215 + $0xf8] sm:$0xf] %v2433
        %2690 = vst [vmem:[%s215 + $0xfc] sm:$0xf] %v2434
        %2691 = vst [vmem:[%s215 + $0x100] sm:$0xf] %v2435
        %2692 = vst [vmem:[%s215 + $0x104] sm:$0xf] %v2436
        %2693 = vst [vmem:[%s215 + $0x108] sm:$0xf] %v2437
        %2694 = vst [vmem:[%s215 + $0x10c] sm:$0xf] %v2438
        %2695 = vst [vmem:[%s215 + $0x110] sm:$0xf] %v2439
        %2696 = vst [vmem:[%s215 + $0x114] sm:$0xf] %v2440
        %2697 = vst [vmem:[%s215 + $0x118] sm:$0xf] %v2441
        %2698 = vst [vmem:[%s215 + $0x11c] sm:$0xf] %v2442
        %2699 = vst [vmem:[%s215 + $0x120] sm:$0xf] %v2443
        %2700 = vst [vmem:[%s215 + $0x124] sm:$0xf] %v2444
        %2701 = vst [vmem:[%s215 + $0x128] sm:$0xf] %v2445
        %2702 = vst [vmem:[%s215 + $0x12c] sm:$0xf] %v2446
        %2703 = vst [vmem:[%s215 + $0x130] sm:$0xf] %v2447
        %2704 = vst [vmem:[%s215 + $0x134] sm:$0xf] %v2448
        %2705 = vst [vmem:[%s215 + $0x138] sm:$0xf] %v2449
        %2706 = vst [vmem:[%s215 + $0x13c] sm:$0xf] %v2450
        %2707 = vst [vmem:[%s215 + $0x140] sm:$0xf] %v2451
        %2708 = vst [vmem:[%s215 + $0x144] sm:$0xf] %v2452
        %2709 = vst [vmem:[%s215 + $0x148] sm:$0xf] %v2453
        %2710 = vst [vmem:[%s215 + $0x14c] sm:$0xf] %v2454
        %2711 = vst [vmem:[%s215 + $0x150] sm:$0xf] %v2455
        %2712 = vst [vmem:[%s215 + $0x154] sm:$0xf] %v2456
        %2713 = vst [vmem:[%s215 + $0x158] sm:$0xf] %v2457
        %2714 = vst [vmem:[%s215 + $0x15c] sm:$0xf] %v2458
        %2715 = vst [vmem:[%s215 + $0x160] sm:$0xf] %v2459
        %2716 = vst [vmem:[%s215 + $0x164] sm:$0xf] %v2460
        %2717 = vst [vmem:[%s215 + $0x168] sm:$0xf] %v2461
        %2718 = vst [vmem:[%s215 + $0x16c] sm:$0xf] %v2462
        %2719 = vst [vmem:[%s215 + $0x170] sm:$0xf] %v2463
        %2720 = vst [vmem:[%s215 + $0x174] sm:$0xf] %v2464
        %2721 = vst [vmem:[%s215 + $0x178] sm:$0xf] %v2465
        %2722 = vst [vmem:[%s215 + $0x17c] sm:$0xf] %v2466
        %2723 = vst [vmem:[%s215 + $0x180] sm:$0xf] %v2467
        %2724 = vst [vmem:[%s215 + $0x184] sm:$0xf] %v2468
        %2725 = vst [vmem:[%s215 + $0x188] sm:$0xf] %v2469
        %2726 = vst [vmem:[%s215 + $0x18c] sm:$0xf] %v2470
        %2727 = vst [vmem:[%s215 + $0x190] sm:$0xf] %v2471
        %2728 = vst [vmem:[%s215 + $0x194] sm:$0xf] %v2472
        %2729 = vst [vmem:[%s215 + $0x198] sm:$0xf] %v2473
        %2730 = vst [vmem:[%s215 + $0x19c] sm:$0xf] %v2474
        %2731 = vst [vmem:[%s215 + $0x1a0] sm:$0xf] %v2475
        %2732 = vst [vmem:[%s215 + $0x1a4] sm:$0xf] %v2476
        %2733 = vst [vmem:[%s215 + $0x1a8] sm:$0xf] %v2477
        %2734 = vst [vmem:[%s215 + $0x1ac] sm:$0xf] %v2478
        %2735 = vst [vmem:[%s215 + $0x1b0] sm:$0xf] %v2479
        %2736 = vst [vmem:[%s215 + $0x1b4] sm:$0xf] %v2480
        %2737 = vst [vmem:[%s215 + $0x1b8] sm:$0xf] %v2481
        %2738 = vst [vmem:[%s215 + $0x1bc] sm:$0xf] %v2482
        %2739 = vst [vmem:[%s215 + $0x1c0] sm:$0xf] %v2483
        %2740 = vst [vmem:[%s215 + $0x1c4] sm:$0xf] %v2484
        %2741 = vst [vmem:[%s215 + $0x1c8] sm:$0xf] %v2485
        %2742 = vst [vmem:[%s215 + $0x1cc] sm:$0xf] %v2486
        %2743 = vst [vmem:[%s215 + $0x1d0] sm:$0xf] %v2487
        %2744 = vst [vmem:[%s215 + $0x1d4] sm:$0xf] %v2488
        %2745 = vst [vmem:[%s215 + $0x1d8] sm:$0xf] %v2489
        %2746 = vst [vmem:[%s215 + $0x1dc] sm:$0xf] %v2490
        %2747 = vst [vmem:[%s215 + $0x1e0] sm:$0xf] %v2491
        %2748 = vst [vmem:[%s215 + $0x1e4] sm:$0xf] %v2492
        %2749 = vst [vmem:[%s215 + $0x1e8] sm:$0xf] %v2493
        %2750 = vst [vmem:[%s215 + $0x1ec] sm:$0xf] %v2494
        %2751 = vst [vmem:[%s215 + $0x1f0] sm:$0xf] %v2495
        %2752 = vst [vmem:[%s215 + $0x1f4] sm:$0xf] %v2496
        %2753 = vst [vmem:[%s215 + $0x1f8] sm:$0xf] %v2497
        %2754 = vst [vmem:[%s215 + $0x1fc] sm:$0xf] %v2498
        %s2755 = sand.u32 %s97, 1
        %s2756 = scalar_lea.sflag [#allocation4], %s2755
        %s2757 = sand.u32 %s97, 1
        %s2758 = smul.addr %s2757, 512
        %s2759 = scalar_lea.vmem [#allocation8], %s2758
        // Predicated region
        $region45: #{tpu_custom_call.1} parent=31 // pred_check
          %p2760 = pneg %p107
        $region46: #{tpu_custom_call.1} parent=31 // pred_check_branch
          %2762 = sbr.rel (%p2760) target = $region48
        $region47: #{tpu_custom_call.1} parent=31 // pred_region
          %s2763 = smul.u32 128, %s21
          %s2765 = ssub.s32 8192, 8192
          %2766 = vsyncadd %s2756, %s2765
          %s2767 = smul.addr %s2763, 64
          %s2768 = scalar_lea.hbm %s3, %s2767
          %s2769 = sshll.u32 %s2759, 4
          %s2770 = int_to_ptr.vmem [resolvable:$true] %s2769
          %2775 = dma.vmem_to_hbm [thread:$0]  %s2770, 8192, %s2768, %s2756, 64, 64, 4
        $region48: #{tpu_custom_call.1} parent=31 // pred_fallthru
          _
      $region32: #{tpu_custom_call.1} parent=5 // pred_fallthru
        _
      %p2776 = scmp.le.s32.totalorder 2, %s16
      // Predicated region
      $region49: #{tpu_custom_call.1} parent=5 // pred_check
        %p2777 = pneg %p2776
      $region50: #{tpu_custom_call.1} parent=5 // pred_check_branch
        %2779 = sbr.rel (%p2777) target = $region52
      $region51: #{tpu_custom_call.1} parent=5 // pred_region
        %s2780 = ssub.s32 %s16, 2
        // Predicated region
        $region53: #{tpu_custom_call.1} parent=51 // pred_check
          %p2781 = pneg %p113
        $region54: #{tpu_custom_call.1} parent=51 // pred_check_branch
          %2783 = sbr.rel (%p2781) target = $region56
        $region55: #{tpu_custom_call.1} parent=51 // pred_region
          %s2784 = sand.u32 %s98, 1
          %s2785 = scalar_lea.sflag [#allocation4], %s2784
          %s2786 = sand.u32 %s98, 1
          %s2787 = smul.addr %s2786, 512
          %s2788 = scalar_lea.vmem [#allocation8], %s2787
          %2789 = dma.done %s2785, 8192
        $region56: #{tpu_custom_call.1} parent=51 // pred_fallthru
          _
      $region52: #{tpu_custom_call.1} parent=5 // pred_fallthru
        _
    $region6: #{tpu_custom_call.1} parent=1 // loop_footer
      %s20 = sadd.s32 1, %s16
    $region7: #{tpu_custom_call.1} parent=1 // loop_footer_branch
      %15 = sbr.rel target = $region3
    $region8: #{tpu_custom_call.1} parent=1 // loop_exit
      _
    %2790 = vsyncpa [#allocation3], 1
    %s2791 = scalar_lea.sflag [#allocation3], 1
    %2792 = vsyncpa %s2791, 1
    %2793 = vsyncpa [#allocation6], 1
    %2794 = vsyncpa [#allocation4], 1
    %s2795 = scalar_lea.sflag [#allocation4], 1
    %2796 = vsyncpa %s2795, 1

</llo_original>
